<compile_context>
chip_gen: v7x
topology: tpu7x:2x2x1
jax: 0.10.0
libtpu: 0.0.40
codegen_flags: <defaults>
</compile_context>

<pallas_src>
import jax
import jax.numpy as jnp
from jax.experimental import pallas as pl
from jax.experimental.pallas import tpu as pltpu

HIDDEN = 200
HIDDEN_PAD = 256            # 200 -> 256 (lane / MXU alignment), zero-padded
OUT_CLASSES = 256
MAX_BATCH_TILE = 1024       # rows per grid step (multiple of 8 and 256)
MEGACORE_MIN_TILE = 256     # only split the grid for megacore if tiles >= this
VMEM_LIMIT_BYTES = 48 * 1024 * 1024   # < 64 MiB v7x physical, > 32 MiB default


def _round_up(a: int, m: int) -> int:
    return (a + m - 1) // m * m


def _cdiv(a: int, b: int) -> int:
    return (a + b - 1) // b


def mlp_kernel(*refs):
    # refs = (x_ref, w1, b1, w2, b2, ..., w6, b6, o_ref)
    x_ref = refs[0]
    o_ref = refs[-1]
    params = refs[1:-1]
    n_layers = len(params) // 2

    h = x_ref[...]                                   # (TB, T_pad) bf16
    for i in range(n_layers):
        w = params[2 * i][...]                       # (in_pad, out_pad) bf16
        b = params[2 * i + 1][...]                   # (1, out_pad) f32, broadcasts
        acc = jnp.dot(h, w, preferred_element_type=jnp.float32) + b
        if i < n_layers - 1:                         # ReLU on all but final Linear
            # Cast to bf16 right after the ReLU: halves the live activation and
            # feeds the next MXU op directly (value was bf16-bound anyway).
            h = jnp.maximum(acc, 0.0).astype(jnp.bfloat16)
        else:
            o_ref[...] = acc.astype(o_ref.dtype)


def _pack_params(params, t_pad):
    """Zero-pad each (W[in,out], b[out]) to lane-aligned shapes; W -> bf16."""
    flat = []
    n = len(params)
    for li, (w, b) in enumerate(params):
        in_dim, out_dim = w.shape
        in_pad = t_pad if li == 0 else HIDDEN_PAD
        out_pad = OUT_CLASSES if li == n - 1 else HIDDEN_PAD
        wp = jnp.zeros((in_pad, out_pad), jnp.float32).at[:in_dim, :out_dim].set(w)
        bp = jnp.zeros((1, out_pad), jnp.float32).at[0, :out_dim].set(b)
        flat.append(wp.astype(jnp.bfloat16))         # MXU operand in bf16
        flat.append(bp)                              # bias stays f32 (VPU path)
        # TODO(synk): for v5e, int8 weights here (~2x MXU rate) if accuracy allows.
    return flat


def _pick_tiling(B: int):
    """Batch padding bounded to <8*n_tiles rows; >=2 tiles for v7x megacore."""
    b_pad8 = _round_up(B, 8)
    n_tiles = max(1, _cdiv(b_pad8, MAX_BATCH_TILE))
    if b_pad8 >= 2 * MEGACORE_MIN_TILE:              # enough rows to split usefully
        n_tiles = max(n_tiles, 2)
    tb = min(MAX_BATCH_TILE, _round_up(_cdiv(b_pad8, n_tiles), 8))
    b_pad = tb * n_tiles
    return tb, b_pad, n_tiles


def mlp_best_forward(x, params, out_dtype=jnp.float32):
    """x: (B, C, T) float; params: list of (W[in,out] f32, b[out] f32), 6 layers.

    Set out_dtype=jnp.bfloat16 to halve output writeback (useful on v6e).
    """
    B, C, T = x.shape
    assert C == 1, "FlattenTranspose + Linear(timesteps, 200) requires channels == 1"

    t_pad = _round_up(T, 128)
    # TODO(synk): if timesteps gets into the tens of thousands, add a K-reduction
    # grid axis for layer 1 instead of keeping full W1 / full x rows resident.
    tb, b_pad, n_tiles = _pick_tiling(B)
    grid = (n_tiles,)

    # Fused host-side pad + bf16 cast (single XLA fusion, half the preamble bytes).
    x2d = x.reshape(B, T).astype(jnp.bfloat16)
    x_p = jnp.pad(x2d, ((0, b_pad - B), (0, t_pad - T)))

    flat = _pack_params(params, t_pad)

    out_shape = jax.ShapeDtypeStruct((b_pad, OUT_CLASSES), out_dtype)
    out_specs = pl.BlockSpec((tb, OUT_CLASSES), lambda i: (i, 0))

    flops = 2 * b_pad * (t_pad * HIDDEN_PAD
                         + 4 * HIDDEN_PAD * HIDDEN_PAD
                         + HIDDEN_PAD * OUT_CLASSES)
    bytes_accessed = (int(x_p.size) * 2
                      + sum(int(a.size) * a.dtype.itemsize for a in flat)
                      + b_pad * OUT_CLASSES * jnp.dtype(out_dtype).itemsize)
    cost = pl.CostEstimate(flops=flops, transcendentals=0,
                           bytes_accessed=bytes_accessed)
    cparams = pltpu.CompilerParams(
        dimension_semantics=("parallel",),
        vmem_limit_bytes=VMEM_LIMIT_BYTES,
    )

    def _call(use_buffered_params: bool):
        in_specs = [pl.BlockSpec((tb, t_pad), lambda i: (i, 0))]    # batch-tiled x
        for arr in flat:                                            # resident params
            if use_buffered_params:
                # Constant index_map -> never re-DMA'd; single buffer saves VMEM.
                spec = pl.BlockSpec(arr.shape, lambda i: (0, 0),
                                    pipeline_mode=pl.Buffered(1))
            else:
                spec = pl.BlockSpec(arr.shape, lambda i: (0, 0))
            in_specs.append(spec)
        return pl.pallas_call(
            mlp_kernel,
            out_shape=out_shape,
            grid=grid,
            in_specs=in_specs,
            out_specs=out_specs,
            compiler_params=cparams,
            cost_estimate=cost,
        )(x_p, *flat)

    try:
        out = _call(True)
    except Exception:
        # Older JAX without BlockSpec pipeline_mode / Buffered(1) support.
        out = _call(False)

    return out[:B]


def xavier_uniform(key, fan_in, fan_out):
    bound = (6.0 / (fan_in + fan_out)) ** 0.5
    # Stored as (in, out) so the kernel computes x @ W (== x @ W_pt.T).
    return jax.random.uniform(key, (fan_in, fan_out), jnp.float32, -bound, bound)


def init_params(key, timesteps):
    dims = [timesteps, HIDDEN, HIDDEN, HIDDEN, HIDDEN, HIDDEN, OUT_CLASSES]
    params = []
    for i in range(len(dims) - 1):
        key, sub = jax.random.split(key)
        w = xavier_uniform(sub, dims[i], dims[i + 1])
        b = jnp.zeros((dims[i + 1],), jnp.float32)   # nn.init.constant_(bias, 0)
        params.append((w, b))
    return params


def mlp_best_reference(x, params):
    """Pure-JAX reference using the same bf16-operand / f32-accumulate recipe."""
    h = x.reshape(x.shape[0], -1).astype(jnp.bfloat16)
    n = len(params)
    for i, (w, b) in enumerate(params):
        acc = jnp.dot(h, w.astype(jnp.bfloat16),
                      preferred_element_type=jnp.float32) + b
        if i < n - 1:
            h = jnp.maximum(acc, 0.0).astype(jnp.bfloat16)
        else:
            h = acc
    return h


if __name__ == "__main__":
    key = jax.random.PRNGKey(0)

    B, C, T = 8, 1, 32                      # small (channels, timesteps) = (1, 32)
    k_x, k_p = jax.random.split(key)
    x = jax.random.normal(k_x, (B, C, T), jnp.float32)
    params = init_params(k_p, T)

    out = mlp_best_forward(x, params)
    out = jax.block_until_ready(out)

    ref = mlp_best_reference(x, params)
    assert out.shape == (B, OUT_CLASSES)
    # Matches the same-precision reference tightly; differs from exact f32 only by
    # the intentional bf16 quantization of the MXU operands / activations.
    assert jnp.allclose(out, ref, atol=2e-3, rtol=2e-3)

    print("KERNEL_OK")
</pallas_src>

<mosaic_0001>
module attributes {stable_mosaic.version = 11 : i64} {
  func.func @mlp_kernel(%arg0: i32, %arg1: memref<8x128xbf16, #tpu.memory_space<vmem>>, %arg2: memref<128x256xbf16, #tpu.memory_space<vmem>>, %arg3: memref<1x256xf32, #tpu.memory_space<vmem>>, %arg4: memref<256x256xbf16, #tpu.memory_space<vmem>>, %arg5: memref<1x256xf32, #tpu.memory_space<vmem>>, %arg6: memref<256x256xbf16, #tpu.memory_space<vmem>>, %arg7: memref<1x256xf32, #tpu.memory_space<vmem>>, %arg8: memref<256x256xbf16, #tpu.memory_space<vmem>>, %arg9: memref<1x256xf32, #tpu.memory_space<vmem>>, %arg10: memref<256x256xbf16, #tpu.memory_space<vmem>>, %arg11: memref<1x256xf32, #tpu.memory_space<vmem>>, %arg12: memref<256x256xbf16, #tpu.memory_space<vmem>>, %arg13: memref<1x256xf32, #tpu.memory_space<vmem>>, %arg14: memref<8x256xf32, #tpu.memory_space<vmem>>) attributes {dimension_semantics = [#tpu.dimension_semantics<parallel>], iteration_bounds = array<i64: 1>, scalar_prefetch = 0 : i64, scratch_operands = 0 : i64, tpu.core_type = #tpu.core_type<tc>, window_params = [{transform_indices = @transform_0, window_bounds = array<i64: 8, 128>}, {pipeline_mode = #tpu.pipeline_mode<synchronous>, transform_indices = @transform_1, window_bounds = array<i64: 128, 256>}, {pipeline_mode = #tpu.pipeline_mode<synchronous>, transform_indices = @transform_2, window_bounds = array<i64: 1, 256>}, {pipeline_mode = #tpu.pipeline_mode<synchronous>, transform_indices = @transform_3, window_bounds = array<i64: 256, 256>}, {pipeline_mode = #tpu.pipeline_mode<synchronous>, transform_indices = @transform_4, window_bounds = array<i64: 1, 256>}, {pipeline_mode = #tpu.pipeline_mode<synchronous>, transform_indices = @transform_5, window_bounds = array<i64: 256, 256>}, {pipeline_mode = #tpu.pipeline_mode<synchronous>, transform_indices = @transform_6, window_bounds = array<i64: 1, 256>}, {pipeline_mode = #tpu.pipeline_mode<synchronous>, transform_indices = @transform_7, window_bounds = array<i64: 256, 256>}, {pipeline_mode = #tpu.pipeline_mode<synchronous>, transform_indices = @transform_8, window_bounds = array<i64: 1, 256>}, {pipeline_mode = #tpu.pipeline_mode<synchronous>, transform_indices = @transform_9, window_bounds = array<i64: 256, 256>}, {pipeline_mode = #tpu.pipeline_mode<synchronous>, transform_indices = @transform_10, window_bounds = array<i64: 1, 256>}, {pipeline_mode = #tpu.pipeline_mode<synchronous>, transform_indices = @transform_11, window_bounds = array<i64: 256, 256>}, {pipeline_mode = #tpu.pipeline_mode<synchronous>, transform_indices = @transform_12, window_bounds = array<i64: 1, 256>}, {transform_indices = @transform_13, window_bounds = array<i64: 8, 256>}]} {
    %c0 = arith.constant 0 : index
    %c0_0 = arith.constant 0 : index
    %0 = vector.load %arg1[%c0, %c0_0] : memref<8x128xbf16, #tpu.memory_space<vmem>>, vector<8x128xbf16>
    %c0_1 = arith.constant 0 : index
    %c0_2 = arith.constant 0 : index
    %1 = vector.load %arg2[%c0_1, %c0_2] : memref<128x256xbf16, #tpu.memory_space<vmem>>, vector<128x256xbf16>
    %c0_3 = arith.constant 0 : index
    %c0_4 = arith.constant 0 : index
    %2 = vector.load %arg3[%c0_3, %c0_4] : memref<1x256xf32, #tpu.memory_space<vmem>>, vector<1x256xf32>
    %cst = arith.constant dense<0.000000e+00> : vector<8x256xf32>
    %3 = tpu.matmul %0, %1, %cst {dimension_numbers = #tpu.dot_dimension_numbers<[1], [0], [0], [1], [0, 0, 1, 1], [], []>} : vector<8x128xbf16>, vector<128x256xbf16>, vector<8x256xf32> -> vector<8x256xf32>
    %4 = vector.broadcast %2 : vector<1x256xf32> to vector<8x256xf32>
    %5 = arith.addf %3, %4 : vector<8x256xf32>
    %cst_5 = arith.constant 0.000000e+00 : f32
    %6 = vector.broadcast %cst_5 : f32 to vector<8x256xf32>
    %7 = arith.maximumf %5, %6 : vector<8x256xf32>
    %8 = arith.truncf %7 : vector<8x256xf32> to vector<8x256xbf16>
    %c0_6 = arith.constant 0 : index
    %c0_7 = arith.constant 0 : index
    %9 = vector.load %arg4[%c0_6, %c0_7] : memref<256x256xbf16, #tpu.memory_space<vmem>>, vector<256x256xbf16>
    %c0_8 = arith.constant 0 : index
    %c0_9 = arith.constant 0 : index
    %10 = vector.load %arg5[%c0_8, %c0_9] : memref<1x256xf32, #tpu.memory_space<vmem>>, vector<1x256xf32>
    %cst_10 = arith.constant dense<0.000000e+00> : vector<8x256xf32>
    %11 = tpu.matmul %8, %9, %cst_10 {dimension_numbers = #tpu.dot_dimension_numbers<[1], [0], [0], [1], [0, 0, 1, 1], [], []>} : vector<8x256xbf16>, vector<256x256xbf16>, vector<8x256xf32> -> vector<8x256xf32>
    %12 = vector.broadcast %10 : vector<1x256xf32> to vector<8x256xf32>
    %13 = arith.addf %11, %12 : vector<8x256xf32>
    %cst_11 = arith.constant 0.000000e+00 : f32
    %14 = vector.broadcast %cst_11 : f32 to vector<8x256xf32>
    %15 = arith.maximumf %13, %14 : vector<8x256xf32>
    %16 = arith.truncf %15 : vector<8x256xf32> to vector<8x256xbf16>
    %c0_12 = arith.constant 0 : index
    %c0_13 = arith.constant 0 : index
    %17 = vector.load %arg6[%c0_12, %c0_13] : memref<256x256xbf16, #tpu.memory_space<vmem>>, vector<256x256xbf16>
    %c0_14 = arith.constant 0 : index
    %c0_15 = arith.constant 0 : index
    %18 = vector.load %arg7[%c0_14, %c0_15] : memref<1x256xf32, #tpu.memory_space<vmem>>, vector<1x256xf32>
    %cst_16 = arith.constant dense<0.000000e+00> : vector<8x256xf32>
    %19 = tpu.matmul %16, %17, %cst_16 {dimension_numbers = #tpu.dot_dimension_numbers<[1], [0], [0], [1], [0, 0, 1, 1], [], []>} : vector<8x256xbf16>, vector<256x256xbf16>, vector<8x256xf32> -> vector<8x256xf32>
    %20 = vector.broadcast %18 : vector<1x256xf32> to vector<8x256xf32>
    %21 = arith.addf %19, %20 : vector<8x256xf32>
    %cst_17 = arith.constant 0.000000e+00 : f32
    %22 = vector.broadcast %cst_17 : f32 to vector<8x256xf32>
    %23 = arith.maximumf %21, %22 : vector<8x256xf32>
    %24 = arith.truncf %23 : vector<8x256xf32> to vector<8x256xbf16>
    %c0_18 = arith.constant 0 : index
    %c0_19 = arith.constant 0 : index
    %25 = vector.load %arg8[%c0_18, %c0_19] : memref<256x256xbf16, #tpu.memory_space<vmem>>, vector<256x256xbf16>
    %c0_20 = arith.constant 0 : index
    %c0_21 = arith.constant 0 : index
    %26 = vector.load %arg9[%c0_20, %c0_21] : memref<1x256xf32, #tpu.memory_space<vmem>>, vector<1x256xf32>
    %cst_22 = arith.constant dense<0.000000e+00> : vector<8x256xf32>
    %27 = tpu.matmul %24, %25, %cst_22 {dimension_numbers = #tpu.dot_dimension_numbers<[1], [0], [0], [1], [0, 0, 1, 1], [], []>} : vector<8x256xbf16>, vector<256x256xbf16>, vector<8x256xf32> -> vector<8x256xf32>
    %28 = vector.broadcast %26 : vector<1x256xf32> to vector<8x256xf32>
    %29 = arith.addf %27, %28 : vector<8x256xf32>
    %cst_23 = arith.constant 0.000000e+00 : f32
    %30 = vector.broadcast %cst_23 : f32 to vector<8x256xf32>
    %31 = arith.maximumf %29, %30 : vector<8x256xf32>
    %32 = arith.truncf %31 : vector<8x256xf32> to vector<8x256xbf16>
    %c0_24 = arith.constant 0 : index
    %c0_25 = arith.constant 0 : index
    %33 = vector.load %arg10[%c0_24, %c0_25] : memref<256x256xbf16, #tpu.memory_space<vmem>>, vector<256x256xbf16>
    %c0_26 = arith.constant 0 : index
    %c0_27 = arith.constant 0 : index
    %34 = vector.load %arg11[%c0_26, %c0_27] : memref<1x256xf32, #tpu.memory_space<vmem>>, vector<1x256xf32>
    %cst_28 = arith.constant dense<0.000000e+00> : vector<8x256xf32>
    %35 = tpu.matmul %32, %33, %cst_28 {dimension_numbers = #tpu.dot_dimension_numbers<[1], [0], [0], [1], [0, 0, 1, 1], [], []>} : vector<8x256xbf16>, vector<256x256xbf16>, vector<8x256xf32> -> vector<8x256xf32>
    %36 = vector.broadcast %34 : vector<1x256xf32> to vector<8x256xf32>
    %37 = arith.addf %35, %36 : vector<8x256xf32>
    %cst_29 = arith.constant 0.000000e+00 : f32
    %38 = vector.broadcast %cst_29 : f32 to vector<8x256xf32>
    %39 = arith.maximumf %37, %38 : vector<8x256xf32>
    %40 = arith.truncf %39 : vector<8x256xf32> to vector<8x256xbf16>
    %c0_30 = arith.constant 0 : index
    %c0_31 = arith.constant 0 : index
    %41 = vector.load %arg12[%c0_30, %c0_31] : memref<256x256xbf16, #tpu.memory_space<vmem>>, vector<256x256xbf16>
    %c0_32 = arith.constant 0 : index
    %c0_33 = arith.constant 0 : index
    %42 = vector.load %arg13[%c0_32, %c0_33] : memref<1x256xf32, #tpu.memory_space<vmem>>, vector<1x256xf32>
    %cst_34 = arith.constant dense<0.000000e+00> : vector<8x256xf32>
    %43 = tpu.matmul %40, %41, %cst_34 {dimension_numbers = #tpu.dot_dimension_numbers<[1], [0], [0], [1], [0, 0, 1, 1], [], []>} : vector<8x256xbf16>, vector<256x256xbf16>, vector<8x256xf32> -> vector<8x256xf32>
    %44 = vector.broadcast %42 : vector<1x256xf32> to vector<8x256xf32>
    %45 = arith.addf %43, %44 : vector<8x256xf32>
    %c0_35 = arith.constant 0 : index
    %c0_36 = arith.constant 0 : index
    %46 = vector.load %arg14[%c0_35, %c0_36] : memref<8x256xf32, #tpu.memory_space<vmem>>, vector<8x256xf32>
    tpu.vector_store %arg14[%c0_35, %c0_36], %45 {strides = array<i32>} : memref<8x256xf32, #tpu.memory_space<vmem>>, vector<8x256xf32>,
    return
  }
  func.func @transform_0(%arg0: i32) -> (i32, i32) {
    %c0_i32 = arith.constant 0 : i32
    %c0_i32_0 = arith.constant 0 : i32
    return %arg0, %c0_i32 : i32, i32
  }
  func.func @transform_1(%arg0: i32) -> (i32, i32) {
    %c0_i32 = arith.constant 0 : i32
    %c0_i32_0 = arith.constant 0 : i32
    %c0_i32_1 = arith.constant 0 : i32
    return %c0_i32, %c0_i32_0 : i32, i32
  }
  func.func @transform_2(%arg0: i32) -> (i32, i32) {
    %c0_i32 = arith.constant 0 : i32
    %c0_i32_0 = arith.constant 0 : i32
    %c0_i32_1 = arith.constant 0 : i32
    return %c0_i32, %c0_i32_0 : i32, i32
  }
  func.func @transform_3(%arg0: i32) -> (i32, i32) {
    %c0_i32 = arith.constant 0 : i32
    %c0_i32_0 = arith.constant 0 : i32
    %c0_i32_1 = arith.constant 0 : i32
    return %c0_i32, %c0_i32_0 : i32, i32
  }
  func.func @transform_4(%arg0: i32) -> (i32, i32) {
    %c0_i32 = arith.constant 0 : i32
    %c0_i32_0 = arith.constant 0 : i32
    %c0_i32_1 = arith.constant 0 : i32
    return %c0_i32, %c0_i32_0 : i32, i32
  }
  func.func @transform_5(%arg0: i32) -> (i32, i32) {
    %c0_i32 = arith.constant 0 : i32
    %c0_i32_0 = arith.constant 0 : i32
    %c0_i32_1 = arith.constant 0 : i32
    return %c0_i32, %c0_i32_0 : i32, i32
  }
  func.func @transform_6(%arg0: i32) -> (i32, i32) {
    %c0_i32 = arith.constant 0 : i32
    %c0_i32_0 = arith.constant 0 : i32
    %c0_i32_1 = arith.constant 0 : i32
    return %c0_i32, %c0_i32_0 : i32, i32
  }
  func.func @transform_7(%arg0: i32) -> (i32, i32) {
    %c0_i32 = arith.constant 0 : i32
    %c0_i32_0 = arith.constant 0 : i32
    %c0_i32_1 = arith.constant 0 : i32
    return %c0_i32, %c0_i32_0 : i32, i32
  }
  func.func @transform_8(%arg0: i32) -> (i32, i32) {
    %c0_i32 = arith.constant 0 : i32
    %c0_i32_0 = arith.constant 0 : i32
    %c0_i32_1 = arith.constant 0 : i32
    return %c0_i32, %c0_i32_0 : i32, i32
  }
  func.func @transform_9(%arg0: i32) -> (i32, i32) {
    %c0_i32 = arith.constant 0 : i32
    %c0_i32_0 = arith.constant 0 : i32
    %c0_i32_1 = arith.constant 0 : i32
    return %c0_i32, %c0_i32_0 : i32, i32
  }
  func.func @transform_10(%arg0: i32) -> (i32, i32) {
    %c0_i32 = arith.constant 0 : i32
    %c0_i32_0 = arith.constant 0 : i32
    %c0_i32_1 = arith.constant 0 : i32
    return %c0_i32, %c0_i32_0 : i32, i32
  }
  func.func @transform_11(%arg0: i32) -> (i32, i32) {
    %c0_i32 = arith.constant 0 : i32
    %c0_i32_0 = arith.constant 0 : i32
    %c0_i32_1 = arith.constant 0 : i32
    return %c0_i32, %c0_i32_0 : i32, i32
  }
  func.func @transform_12(%arg0: i32) -> (i32, i32) {
    %c0_i32 = arith.constant 0 : i32
    %c0_i32_0 = arith.constant 0 : i32
    %c0_i32_1 = arith.constant 0 : i32
    return %c0_i32, %c0_i32_0 : i32, i32
  }
  func.func @transform_13(%arg0: i32) -> (i32, i32) {
    %c0_i32 = arith.constant 0 : i32
    %c0_i32_0 = arith.constant 0 : i32
    return %arg0, %c0_i32 : i32, i32
  }
}

module attributes {stable_mosaic.version = 11 : i64} {
  func.func @mlp_kernel(%arg0: i32, %arg1: memref<8x128xbf16, #tpu.memory_space<vmem>>, %arg2: memref<128x256xbf16, #tpu.memory_space<vmem>>, %arg3: memref<1x256xf32, #tpu.memory_space<vmem>>, %arg4: memref<256x256xbf16, #tpu.memory_space<vmem>>, %arg5: memref<1x256xf32, #tpu.memory_space<vmem>>, %arg6: memref<256x256xbf16, #tpu.memory_space<vmem>>, %arg7: memref<1x256xf32, #tpu.memory_space<vmem>>, %arg8: memref<256x256xbf16, #tpu.memory_space<vmem>>, %arg9: memref<1x256xf32, #tpu.memory_space<vmem>>, %arg10: memref<256x256xbf16, #tpu.memory_space<vmem>>, %arg11: memref<1x256xf32, #tpu.memory_space<vmem>>, %arg12: memref<256x256xbf16, #tpu.memory_space<vmem>>, %arg13: memref<1x256xf32, #tpu.memory_space<vmem>>, %arg14: memref<8x256xf32, #tpu.memory_space<vmem>>) attributes {dimension_semantics = [#tpu.dimension_semantics<parallel>], iteration_bounds = array<i64: 1>, scalar_prefetch = 0 : i64, scratch_operands = 0 : i64, tpu.core_type = #tpu.core_type<tc>, window_params = [{transform_indices = @transform_0, window_bounds = array<i64: 8, 128>}, {pipeline_mode = #tpu.pipeline_mode<synchronous>, transform_indices = @transform_1, window_bounds = array<i64: 128, 256>}, {pipeline_mode = #tpu.pipeline_mode<synchronous>, transform_indices = @transform_2, window_bounds = array<i64: 1, 256>}, {pipeline_mode = #tpu.pipeline_mode<synchronous>, transform_indices = @transform_3, window_bounds = array<i64: 256, 256>}, {pipeline_mode = #tpu.pipeline_mode<synchronous>, transform_indices = @transform_4, window_bounds = array<i64: 1, 256>}, {pipeline_mode = #tpu.pipeline_mode<synchronous>, transform_indices = @transform_5, window_bounds = array<i64: 256, 256>}, {pipeline_mode = #tpu.pipeline_mode<synchronous>, transform_indices = @transform_6, window_bounds = array<i64: 1, 256>}, {pipeline_mode = #tpu.pipeline_mode<synchronous>, transform_indices = @transform_7, window_bounds = array<i64: 256, 256>}, {pipeline_mode = #tpu.pipeline_mode<synchronous>, transform_indices = @transform_8, window_bounds = array<i64: 1, 256>}, {pipeline_mode = #tpu.pipeline_mode<synchronous>, transform_indices = @transform_9, window_bounds = array<i64: 256, 256>}, {pipeline_mode = #tpu.pipeline_mode<synchronous>, transform_indices = @transform_10, window_bounds = array<i64: 1, 256>}, {pipeline_mode = #tpu.pipeline_mode<synchronous>, transform_indices = @transform_11, window_bounds = array<i64: 256, 256>}, {pipeline_mode = #tpu.pipeline_mode<synchronous>, transform_indices = @transform_12, window_bounds = array<i64: 1, 256>}, {transform_indices = @transform_13, window_bounds = array<i64: 8, 256>}]} {
    %c0 = arith.constant 0 : index
    %c0_0 = arith.constant 0 : index
    %0 = vector.load %arg1[%c0, %c0_0] : memref<8x128xbf16, #tpu.memory_space<vmem>>, vector<8x128xbf16>
    %c0_1 = arith.constant 0 : index
    %c0_2 = arith.constant 0 : index
    %1 = vector.load %arg2[%c0_1, %c0_2] : memref<128x256xbf16, #tpu.memory_space<vmem>>, vector<128x256xbf16>
    %c0_3 = arith.constant 0 : index
    %c0_4 = arith.constant 0 : index
    %2 = vector.load %arg3[%c0_3, %c0_4] : memref<1x256xf32, #tpu.memory_space<vmem>>, vector<1x256xf32>
    %cst = arith.constant dense<0.000000e+00> : vector<8x256xf32>
    %3 = tpu.matmul %0, %1, %cst {dimension_numbers = #tpu.dot_dimension_numbers<[1], [0], [0], [1], [0, 0, 1, 1], [], []>} : vector<8x128xbf16>, vector<128x256xbf16>, vector<8x256xf32> -> vector<8x256xf32>
    %4 = vector.broadcast %2 : vector<1x256xf32> to vector<8x256xf32>
    %5 = arith.addf %3, %4 : vector<8x256xf32>
    %cst_5 = arith.constant 0.000000e+00 : f32
    %6 = vector.broadcast %cst_5 : f32 to vector<8x256xf32>
    %7 = arith.maximumf %5, %6 : vector<8x256xf32>
    %8 = arith.truncf %7 : vector<8x256xf32> to vector<8x256xbf16>
    %c0_6 = arith.constant 0 : index
    %c0_7 = arith.constant 0 : index
    %9 = vector.load %arg4[%c0_6, %c0_7] : memref<256x256xbf16, #tpu.memory_space<vmem>>, vector<256x256xbf16>
    %c0_8 = arith.constant 0 : index
    %c0_9 = arith.constant 0 : index
    %10 = vector.load %arg5[%c0_8, %c0_9] : memref<1x256xf32, #tpu.memory_space<vmem>>, vector<1x256xf32>
    %cst_10 = arith.constant dense<0.000000e+00> : vector<8x256xf32>
    %11 = tpu.matmul %8, %9, %cst_10 {dimension_numbers = #tpu.dot_dimension_numbers<[1], [0], [0], [1], [0, 0, 1, 1], [], []>} : vector<8x256xbf16>, vector<256x256xbf16>, vector<8x256xf32> -> vector<8x256xf32>
    %12 = vector.broadcast %10 : vector<1x256xf32> to vector<8x256xf32>
    %13 = arith.addf %11, %12 : vector<8x256xf32>
    %cst_11 = arith.constant 0.000000e+00 : f32
    %14 = vector.broadcast %cst_11 : f32 to vector<8x256xf32>
    %15 = arith.maximumf %13, %14 : vector<8x256xf32>
    %16 = arith.truncf %15 : vector<8x256xf32> to vector<8x256xbf16>
    %c0_12 = arith.constant 0 : index
    %c0_13 = arith.constant 0 : index
    %17 = vector.load %arg6[%c0_12, %c0_13] : memref<256x256xbf16, #tpu.memory_space<vmem>>, vector<256x256xbf16>
    %c0_14 = arith.constant 0 : index
    %c0_15 = arith.constant 0 : index
    %18 = vector.load %arg7[%c0_14, %c0_15] : memref<1x256xf32, #tpu.memory_space<vmem>>, vector<1x256xf32>
    %cst_16 = arith.constant dense<0.000000e+00> : vector<8x256xf32>
    %19 = tpu.matmul %16, %17, %cst_16 {dimension_numbers = #tpu.dot_dimension_numbers<[1], [0], [0], [1], [0, 0, 1, 1], [], []>} : vector<8x256xbf16>, vector<256x256xbf16>, vector<8x256xf32> -> vector<8x256xf32>
    %20 = vector.broadcast %18 : vector<1x256xf32> to vector<8x256xf32>
    %21 = arith.addf %19, %20 : vector<8x256xf32>
    %cst_17 = arith.constant 0.000000e+00 : f32
    %22 = vector.broadcast %cst_17 : f32 to vector<8x256xf32>
    %23 = arith.maximumf %21, %22 : vector<8x256xf32>
    %24 = arith.truncf %23 : vector<8x256xf32> to vector<8x256xbf16>
    %c0_18 = arith.constant 0 : index
    %c0_19 = arith.constant 0 : index
    %25 = vector.load %arg8[%c0_18, %c0_19] : memref<256x256xbf16, #tpu.memory_space<vmem>>, vector<256x256xbf16>
    %c0_20 = arith.constant 0 : index
    %c0_21 = arith.constant 0 : index
    %26 = vector.load %arg9[%c0_20, %c0_21] : memref<1x256xf32, #tpu.memory_space<vmem>>, vector<1x256xf32>
    %cst_22 = arith.constant dense<0.000000e+00> : vector<8x256xf32>
    %27 = tpu.matmul %24, %25, %cst_22 {dimension_numbers = #tpu.dot_dimension_numbers<[1], [0], [0], [1], [0, 0, 1, 1], [], []>} : vector<8x256xbf16>, vector<256x256xbf16>, vector<8x256xf32> -> vector<8x256xf32>
    %28 = vector.broadcast %26 : vector<1x256xf32> to vector<8x256xf32>
    %29 = arith.addf %27, %28 : vector<8x256xf32>
    %cst_23 = arith.constant 0.000000e+00 : f32
    %30 = vector.broadcast %cst_23 : f32 to vector<8x256xf32>
    %31 = arith.maximumf %29, %30 : vector<8x256xf32>
    %32 = arith.truncf %31 : vector<8x256xf32> to vector<8x256xbf16>
    %c0_24 = arith.constant 0 : index
    %c0_25 = arith.constant 0 : index
    %33 = vector.load %arg10[%c0_24, %c0_25] : memref<256x256xbf16, #tpu.memory_space<vmem>>, vector<256x256xbf16>
    %c0_26 = arith.constant 0 : index
    %c0_27 = arith.constant 0 : index
    %34 = vector.load %arg11[%c0_26, %c0_27] : memref<1x256xf32, #tpu.memory_space<vmem>>, vector<1x256xf32>
    %cst_28 = arith.constant dense<0.000000e+00> : vector<8x256xf32>
    %35 = tpu.matmul %32, %33, %cst_28 {dimension_numbers = #tpu.dot_dimension_numbers<[1], [0], [0], [1], [0, 0, 1, 1], [], []>} : vector<8x256xbf16>, vector<256x256xbf16>, vector<8x256xf32> -> vector<8x256xf32>
    %36 = vector.broadcast %34 : vector<1x256xf32> to vector<8x256xf32>
    %37 = arith.addf %35, %36 : vector<8x256xf32>
    %cst_29 = arith.constant 0.000000e+00 : f32
    %38 = vector.broadcast %cst_29 : f32 to vector<8x256xf32>
    %39 = arith.maximumf %37, %38 : vector<8x256xf32>
    %40 = arith.truncf %39 : vector<8x256xf32> to vector<8x256xbf16>
    %c0_30 = arith.constant 0 : index
    %c0_31 = arith.constant 0 : index
    %41 = vector.load %arg12[%c0_30, %c0_31] : memref<256x256xbf16, #tpu.memory_space<vmem>>, vector<256x256xbf16>
    %c0_32 = arith.constant 0 : index
    %c0_33 = arith.constant 0 : index
    %42 = vector.load %arg13[%c0_32, %c0_33] : memref<1x256xf32, #tpu.memory_space<vmem>>, vector<1x256xf32>
    %cst_34 = arith.constant dense<0.000000e+00> : vector<8x256xf32>
    %43 = tpu.matmul %40, %41, %cst_34 {dimension_numbers = #tpu.dot_dimension_numbers<[1], [0], [0], [1], [0, 0, 1, 1], [], []>} : vector<8x256xbf16>, vector<256x256xbf16>, vector<8x256xf32> -> vector<8x256xf32>
    %44 = vector.broadcast %42 : vector<1x256xf32> to vector<8x256xf32>
    %45 = arith.addf %43, %44 : vector<8x256xf32>
    %c0_35 = arith.constant 0 : index
    %c0_36 = arith.constant 0 : index
    %46 = vector.load %arg14[%c0_35, %c0_36] : memref<8x256xf32, #tpu.memory_space<vmem>>, vector<8x256xf32>
    tpu.vector_store %arg14[%c0_35, %c0_36], %45 {strides = array<i32>} : memref<8x256xf32, #tpu.memory_space<vmem>>, vector<8x256xf32>,
    return
  }
  func.func @transform_0(%arg0: i32) -> (i32, i32) {
    %c0_i32 = arith.constant 0 : i32
    %c0_i32_0 = arith.constant 0 : i32
    return %arg0, %c0_i32 : i32, i32
  }
  func.func @transform_1(%arg0: i32) -> (i32, i32) {
    %c0_i32 = arith.constant 0 : i32
    %c0_i32_0 = arith.constant 0 : i32
    %c0_i32_1 = arith.constant 0 : i32
    return %c0_i32, %c0_i32_0 : i32, i32
  }
  func.func @transform_2(%arg0: i32) -> (i32, i32) {
    %c0_i32 = arith.constant 0 : i32
    %c0_i32_0 = arith.constant 0 : i32
    %c0_i32_1 = arith.constant 0 : i32
    return %c0_i32, %c0_i32_0 : i32, i32
  }
  func.func @transform_3(%arg0: i32) -> (i32, i32) {
    %c0_i32 = arith.constant 0 : i32
    %c0_i32_0 = arith.constant 0 : i32
    %c0_i32_1 = arith.constant 0 : i32
    return %c0_i32, %c0_i32_0 : i32, i32
  }
  func.func @transform_4(%arg0: i32) -> (i32, i32) {
    %c0_i32 = arith.constant 0 : i32
    %c0_i32_0 = arith.constant 0 : i32
    %c0_i32_1 = arith.constant 0 : i32
    return %c0_i32, %c0_i32_0 : i32, i32
  }
  func.func @transform_5(%arg0: i32) -> (i32, i32) {
    %c0_i32 = arith.constant 0 : i32
    %c0_i32_0 = arith.constant 0 : i32
    %c0_i32_1 = arith.constant 0 : i32
    return %c0_i32, %c0_i32_0 : i32, i32
  }
  func.func @transform_6(%arg0: i32) -> (i32, i32) {
    %c0_i32 = arith.constant 0 : i32
    %c0_i32_0 = arith.constant 0 : i32
    %c0_i32_1 = arith.constant 0 : i32
    return %c0_i32, %c0_i32_0 : i32, i32
  }
  func.func @transform_7(%arg0: i32) -> (i32, i32) {
    %c0_i32 = arith.constant 0 : i32
    %c0_i32_0 = arith.constant 0 : i32
    %c0_i32_1 = arith.constant 0 : i32
    return %c0_i32, %c0_i32_0 : i32, i32
  }
  func.func @transform_8(%arg0: i32) -> (i32, i32) {
    %c0_i32 = arith.constant 0 : i32
    %c0_i32_0 = arith.constant 0 : i32
    %c0_i32_1 = arith.constant 0 : i32
    return %c0_i32, %c0_i32_0 : i32, i32
  }
  func.func @transform_9(%arg0: i32) -> (i32, i32) {
    %c0_i32 = arith.constant 0 : i32
    %c0_i32_0 = arith.constant 0 : i32
    %c0_i32_1 = arith.constant 0 : i32
    return %c0_i32, %c0_i32_0 : i32, i32
  }
  func.func @transform_10(%arg0: i32) -> (i32, i32) {
    %c0_i32 = arith.constant 0 : i32
    %c0_i32_0 = arith.constant 0 : i32
    %c0_i32_1 = arith.constant 0 : i32
    return %c0_i32, %c0_i32_0 : i32, i32
  }
  func.func @transform_11(%arg0: i32) -> (i32, i32) {
    %c0_i32 = arith.constant 0 : i32
    %c0_i32_0 = arith.constant 0 : i32
    %c0_i32_1 = arith.constant 0 : i32
    return %c0_i32, %c0_i32_0 : i32, i32
  }
  func.func @transform_12(%arg0: i32) -> (i32, i32) {
    %c0_i32 = arith.constant 0 : i32
    %c0_i32_0 = arith.constant 0 : i32
    %c0_i32_1 = arith.constant 0 : i32
    return %c0_i32, %c0_i32_0 : i32, i32
  }
  func.func @transform_13(%arg0: i32) -> (i32, i32) {
    %c0_i32 = arith.constant 0 : i32
    %c0_i32_0 = arith.constant 0 : i32
    return %arg0, %c0_i32 : i32, i32
  }
}

</mosaic_0001>

<llo_original>
// kernel: tpu_custom_call.1
$region0: #{tpu_custom_call.1}
  #allocation0 [shape = 'u32[]', space=smem, size = 0x4, offset = 0x4, fixed_abs, tag = 'smem constant byte address 0x4 - core index']
  #allocation1 [shape = 'u32[144,128]{1,0:T(1,128)}', space=vmem, size = 0x12000, scoped, tag = 'internal scratch']
  %s0 = inlined_call_operand.hbm [shape: bf16[8,128], index: 0, kind: input, shape index: {}]
  %s1 = inlined_call_operand.hbm [shape: bf16[128,256], index: 1, kind: input, shape index: {}]
  %s2 = inlined_call_operand.vmem [shape: f32[1,256], index: 2, kind: input, shape index: {}]
  %s3 = inlined_call_operand.hbm [shape: bf16[256,256], index: 3, kind: input, shape index: {}]
  %s4 = inlined_call_operand.vmem [shape: f32[1,256], index: 4, kind: input, shape index: {}]
  %s5 = inlined_call_operand.hbm [shape: bf16[256,256], index: 5, kind: input, shape index: {}]
  %s6 = inlined_call_operand.vmem [shape: f32[1,256], index: 6, kind: input, shape index: {}]
  %s7 = inlined_call_operand.hbm [shape: bf16[256,256], index: 7, kind: input, shape index: {}]
  %s8 = inlined_call_operand.vmem [shape: f32[1,256], index: 8, kind: input, shape index: {}]
  %s9 = inlined_call_operand.hbm [shape: bf16[256,256], index: 9, kind: input, shape index: {}]
  %s10 = inlined_call_operand.vmem [shape: f32[1,256], index: 10, kind: input, shape index: {}]
  %s11 = inlined_call_operand.hbm [shape: bf16[256,256], index: 11, kind: input, shape index: {}]
  %s12 = inlined_call_operand.vmem [shape: f32[1,256], index: 12, kind: input, shape index: {}]
  %s13 = inlined_call_operand.hbm [shape: f32[8,256], index: 13, kind: output, shape index: {}]
  %s14 = sld [smem:[#allocation0]]
  $region90: #{tpu_custom_call.1} parent=0
    _
  %s16 = ssub.s32 1, %s14
  %s17 = scalar_select 0, %s16, %s14
  $region1: #{tpu_custom_call.1} parent=0
    #allocation2 [shape = 'u8[2048]{0}', space=vmem, size = 0x800, scoped, tag = 'input window, operand 0, single buffered']
    #allocation3 [shape = 's32[1]{0}', space=sflag, size = 0x4, scoped, tag = 'scoped memory for tpu_custom_call.1']
    #allocation4 [shape = 's32[1]{0}', space=sflag, size = 0x4, scoped, tag = 'scoped memory for tpu_custom_call.1']
    #allocation5 [shape = 'u8[65536]{0}', space=vmem, size = 0x10000, scoped, tag = 'input window, operand 1, single buffered']
    #allocation6 [shape = 's32[1]{0}', space=sflag, size = 0x4, scoped, tag = 'scoped memory for tpu_custom_call.1']
    #allocation7 [shape = 'u8[131072]{0}', space=vmem, size = 0x20000, scoped, tag = 'input window, operand 3, single buffered']
    #allocation8 [shape = 'u8[131072]{0}', space=vmem, size = 0x20000, scoped, tag = 'input window, operand 5, single buffered']
    #allocation9 [shape = 's32[1]{0}', space=sflag, size = 0x4, scoped, tag = 'scoped memory for tpu_custom_call.1']
    #allocation10 [shape = 'u8[131072]{0}', space=vmem, size = 0x20000, scoped, tag = 'input window, operand 7, single buffered']
    #allocation11 [shape = 'u8[131072]{0}', space=vmem, size = 0x20000, scoped, tag = 'input window, operand 9, single buffered']
    #allocation12 [shape = 's32[1]{0}', space=sflag, size = 0x4, scoped, tag = 'scoped memory for tpu_custom_call.1']
    #allocation13 [shape = 'u8[131072]{0}', space=vmem, size = 0x20000, scoped, tag = 'input window, operand 11, single buffered']
    #allocation14 [shape = 'u8[8192]{0}', space=vmem, size = 0x2000, scoped, tag = 'output window, operand 0, single buffered']
    %18 = vsyncpa [#allocation3], 0
    %19 = vsyncpa [#allocation6], 0
    %20 = vsyncpa [#allocation9], 0
    %21 = vsyncpa [#allocation12], 0
    %22 = vsyncpa [#allocation4], 0
    // Predicated region
    $region2: #{tpu_custom_call.1} parent=1 // pred_check
      _
    $region3: #{tpu_custom_call.1} parent=1 // pred_check_branch
      %24 = sbr.rel (0) target = $region5
    $region4: #{tpu_custom_call.1} parent=1 // pred_region
      %s26 = ssub.s32 64, 64
      %27 = vsyncadd [#allocation3], %s26
      %s29 = sshll.u32 [#allocation2], 4
      %s30 = int_to_ptr.vmem [resolvable:$true] %s29
      %32 = dma.hbm_to_vmem [thread:$0]  %s0, 64, %s30, [#allocation3]
    $region5: #{tpu_custom_call.1} parent=1 // pred_fallthru
      _
    // Predicated region
    $region6: #{tpu_custom_call.1} parent=1 // pred_check
      _
    $region7: #{tpu_custom_call.1} parent=1 // pred_check_branch
      %34 = sbr.rel (0) target = $region9
    $region8: #{tpu_custom_call.1} parent=1 // pred_region
      %s36 = ssub.s32 2048, 2048
      %37 = vsyncadd [#allocation6], %s36
      %s38 = sshll.u32 [#allocation5], 4
      %s39 = int_to_ptr.vmem [resolvable:$true] %s38
      %44 = dma.hbm_to_vmem [thread:$0]  %s1, 2048, %s39, [#allocation6], 128, 128, 8
    $region9: #{tpu_custom_call.1} parent=1 // pred_fallthru
      _
    // Predicated region
    $region10: #{tpu_custom_call.1} parent=1 // pred_check
      _
    $region11: #{tpu_custom_call.1} parent=1 // pred_check_branch
      %46 = sbr.rel (0) target = $region13
    $region12: #{tpu_custom_call.1} parent=1 // pred_region
      _
    $region13: #{tpu_custom_call.1} parent=1 // pred_fallthru
      _
    // Predicated region
    $region14: #{tpu_custom_call.1} parent=1 // pred_check
      _
    $region15: #{tpu_custom_call.1} parent=1 // pred_check_branch
      %48 = sbr.rel (0) target = $region17
    $region16: #{tpu_custom_call.1} parent=1 // pred_region
      %s50 = ssub.s32 4096, 4096
      %51 = vsyncadd [#allocation6], %s50
      %s52 = sshll.u32 [#allocation7], 4
      %s53 = int_to_ptr.vmem [resolvable:$true] %s52
      %58 = dma.hbm_to_vmem [thread:$0]  %s3, 4096, %s53, [#allocation6], 128, 128, 8
    $region17: #{tpu_custom_call.1} parent=1 // pred_fallthru
      _
    // Predicated region
    $region18: #{tpu_custom_call.1} parent=1 // pred_check
      _
    $region19: #{tpu_custom_call.1} parent=1 // pred_check_branch
      %60 = sbr.rel (0) target = $region21
    $region20: #{tpu_custom_call.1} parent=1 // pred_region
      _
    $region21: #{tpu_custom_call.1} parent=1 // pred_fallthru
      _
    // Predicated region
    $region22: #{tpu_custom_call.1} parent=1 // pred_check
      _
    $region23: #{tpu_custom_call.1} parent=1 // pred_check_branch
      %62 = sbr.rel (0) target = $region25
    $region24: #{tpu_custom_call.1} parent=1 // pred_region
      %s64 = ssub.s32 4096, 4096
      %65 = vsyncadd [#allocation9], %s64
      %s66 = sshll.u32 [#allocation8], 4
      %s67 = int_to_ptr.vmem [resolvable:$true] %s66
      %72 = dma.hbm_to_vmem [thread:$0]  %s5, 4096, %s67, [#allocation9], 128, 128, 8
    $region25: #{tpu_custom_call.1} parent=1 // pred_fallthru
      _
    // Predicated region
    $region26: #{tpu_custom_call.1} parent=1 // pred_check
      _
    $region27: #{tpu_custom_call.1} parent=1 // pred_check_branch
      %74 = sbr.rel (0) target = $region29
    $region28: #{tpu_custom_call.1} parent=1 // pred_region
      _
    $region29: #{tpu_custom_call.1} parent=1 // pred_fallthru
      _
    // Predicated region
    $region30: #{tpu_custom_call.1} parent=1 // pred_check
      _
    $region31: #{tpu_custom_call.1} parent=1 // pred_check_branch
      %76 = sbr.rel (0) target = $region33
    $region32: #{tpu_custom_call.1} parent=1 // pred_region
      %s78 = ssub.s32 4096, 4096
      %79 = vsyncadd [#allocation9], %s78
      %s80 = sshll.u32 [#allocation10], 4
      %s81 = int_to_ptr.vmem [resolvable:$true] %s80
      %86 = dma.hbm_to_vmem [thread:$0]  %s7, 4096, %s81, [#allocation9], 128, 128, 8
    $region33: #{tpu_custom_call.1} parent=1 // pred_fallthru
      _
    // Predicated region
    $region34: #{tpu_custom_call.1} parent=1 // pred_check
      _
    $region35: #{tpu_custom_call.1} parent=1 // pred_check_branch
      %88 = sbr.rel (0) target = $region37
    $region36: #{tpu_custom_call.1} parent=1 // pred_region
      _
    $region37: #{tpu_custom_call.1} parent=1 // pred_fallthru
      _
    // Predicated region
    $region38: #{tpu_custom_call.1} parent=1 // pred_check
      _
    $region39: #{tpu_custom_call.1} parent=1 // pred_check_branch
      %90 = sbr.rel (0) target = $region41
    $region40: #{tpu_custom_call.1} parent=1 // pred_region
      %s92 = ssub.s32 4096, 4096
      %93 = vsyncadd [#allocation12], %s92
      %s94 = sshll.u32 [#allocation11], 4
      %s95 = int_to_ptr.vmem [resolvable:$true] %s94
      %100 = dma.hbm_to_vmem [thread:$0]  %s9, 4096, %s95, [#allocation12], 128, 128, 8
    $region41: #{tpu_custom_call.1} parent=1 // pred_fallthru
      _
    // Predicated region
    $region42: #{tpu_custom_call.1} parent=1 // pred_check
      _
    $region43: #{tpu_custom_call.1} parent=1 // pred_check_branch
      %102 = sbr.rel (0) target = $region45
    $region44: #{tpu_custom_call.1} parent=1 // pred_region
      _
    $region45: #{tpu_custom_call.1} parent=1 // pred_fallthru
      _
    // Predicated region
    $region46: #{tpu_custom_call.1} parent=1 // pred_check
      _
    $region47: #{tpu_custom_call.1} parent=1 // pred_check_branch
      %104 = sbr.rel (0) target = $region49
    $region48: #{tpu_custom_call.1} parent=1 // pred_region
      %s106 = ssub.s32 4096, 4096
      %107 = vsyncadd [#allocation12], %s106
      %s108 = sshll.u32 [#allocation13], 4
      %s109 = int_to_ptr.vmem [resolvable:$true] %s108
      %114 = dma.hbm_to_vmem [thread:$0]  %s11, 4096, %s109, [#allocation12], 128, 128, 8
    $region49: #{tpu_custom_call.1} parent=1 // pred_fallthru
      _
    // Predicated region
    $region50: #{tpu_custom_call.1} parent=1 // pred_check
      _
    $region51: #{tpu_custom_call.1} parent=1 // pred_check_branch
      %116 = sbr.rel (0) target = $region53
    $region52: #{tpu_custom_call.1} parent=1 // pred_region
      _
    $region53: #{tpu_custom_call.1} parent=1 // pred_fallthru
      _
    // Predicated region
    $region54: #{tpu_custom_call.1} parent=1 // pred_check
      _
    $region55: #{tpu_custom_call.1} parent=1 // pred_check_branch
      %118 = sbr.rel (0) target = $region57
    $region56: #{tpu_custom_call.1} parent=1 // pred_region
      %119 = dma.done [#allocation3], 64
    $region57: #{tpu_custom_call.1} parent=1 // pred_fallthru
      _
    // Predicated region
    $region58: #{tpu_custom_call.1} parent=1 // pred_check
      _
    $region59: #{tpu_custom_call.1} parent=1 // pred_check_branch
      %121 = sbr.rel (0) target = $region61
    $region60: #{tpu_custom_call.1} parent=1 // pred_region
      %122 = dma.done [#allocation6], 2048
    $region61: #{tpu_custom_call.1} parent=1 // pred_fallthru
      _
    // Predicated region
    $region62: #{tpu_custom_call.1} parent=1 // pred_check
      _
    $region63: #{tpu_custom_call.1} parent=1 // pred_check_branch
      %124 = sbr.rel (0) target = $region65
    $region64: #{tpu_custom_call.1} parent=1 // pred_region
      %125 = dma.done [#allocation6], 4096
    $region65: #{tpu_custom_call.1} parent=1 // pred_fallthru
      _
    // Predicated region
    $region66: #{tpu_custom_call.1} parent=1 // pred_check
      _
    $region67: #{tpu_custom_call.1} parent=1 // pred_check_branch
      %127 = sbr.rel (0) target = $region69
    $region68: #{tpu_custom_call.1} parent=1 // pred_region
      %128 = dma.done [#allocation9], 4096
    $region69: #{tpu_custom_call.1} parent=1 // pred_fallthru
      _
    // Predicated region
    $region70: #{tpu_custom_call.1} parent=1 // pred_check
      _
    $region71: #{tpu_custom_call.1} parent=1 // pred_check_branch
      %130 = sbr.rel (0) target = $region73
    $region72: #{tpu_custom_call.1} parent=1 // pred_region
      %131 = dma.done [#allocation9], 4096
    $region73: #{tpu_custom_call.1} parent=1 // pred_fallthru
      _
    // Predicated region
    $region74: #{tpu_custom_call.1} parent=1 // pred_check
      _
    $region75: #{tpu_custom_call.1} parent=1 // pred_check_branch
      %133 = sbr.rel (0) target = $region77
    $region76: #{tpu_custom_call.1} parent=1 // pred_region
      %134 = dma.done [#allocation12], 4096
    $region77: #{tpu_custom_call.1} parent=1 // pred_fallthru
      _
    // Predicated region
    $region78: #{tpu_custom_call.1} parent=1 // pred_check
      _
    $region79: #{tpu_custom_call.1} parent=1 // pred_check_branch
      %136 = sbr.rel (0) target = $region81
    $region80: #{tpu_custom_call.1} parent=1 // pred_region
      %137 = dma.done [#allocation12], 4096
    $region81: #{tpu_custom_call.1} parent=1 // pred_fallthru
      _
    %v139 = vld [vmem:[#allocation2] sm:$0xf]
    %v140 = vld [vmem:[#allocation5] sm:$0xff]
    %v141 = vld [vmem:[#allocation5 + $0x8] sm:$0xff]
    %v142 = vld [vmem:[#allocation5 + $0x10] sm:$0xff]
    %v143 = vld [vmem:[#allocation5 + $0x18] sm:$0xff]
    %v144 = vld [vmem:[#allocation5 + $0x20] sm:$0xff]
    %v145 = vld [vmem:[#allocation5 + $0x28] sm:$0xff]
    %v146 = vld [vmem:[#allocation5 + $0x30] sm:$0xff]
    %v147 = vld [vmem:[#allocation5 + $0x38] sm:$0xff]
    %v148 = vld [vmem:[#allocation5 + $0x40] sm:$0xff]
    %v149 = vld [vmem:[#allocation5 + $0x48] sm:$0xff]
    %v150 = vld [vmem:[#allocation5 + $0x50] sm:$0xff]
    %v151 = vld [vmem:[#allocation5 + $0x58] sm:$0xff]
    %v152 = vld [vmem:[#allocation5 + $0x60] sm:$0xff]
    %v153 = vld [vmem:[#allocation5 + $0x68] sm:$0xff]
    %v154 = vld [vmem:[#allocation5 + $0x70] sm:$0xff]
    %v155 = vld [vmem:[#allocation5 + $0x78] sm:$0xff]
    %v156 = vld [vmem:[%s2] sm:$0x3]
    %v158 = vlaneseq
    %v159 = vshrl.u32 %v158, 7
    %v160 = vsub.s32 0, %v159
    %v161 = vrot.slane %v156, %v160
    %v162 = vlaneseq
    %v163 = vshrl.u32 %v162, 7
    %v164 = vsub.s32 1, %v163
    %v165 = vrot.slane %v156, %v164
    %v184 = vunpack.c.l.b16 %v140
    %v185 = vunpack.c.h.b16 %v140
    %v186 = vunpack.c.l.b16 %v141
    %v187 = vunpack.c.h.b16 %v141
    %v188 = vunpack.c.l.b16 %v142
    %v189 = vunpack.c.h.b16 %v142
    %v190 = vunpack.c.l.b16 %v143
    %v191 = vunpack.c.h.b16 %v143
    %v192 = vunpack.c.l.b16 %v144
    %v193 = vunpack.c.h.b16 %v144
    %v194 = vunpack.c.l.b16 %v145
    %v195 = vunpack.c.h.b16 %v145
    %v196 = vunpack.c.l.b16 %v146
    %v197 = vunpack.c.h.b16 %v146
    %v198 = vunpack.c.l.b16 %v147
    %v199 = vunpack.c.h.b16 %v147
    %v200 = vunpack.c.l.b16 %v148
    %v201 = vunpack.c.h.b16 %v148
    %v202 = vunpack.c.l.b16 %v149
    %v203 = vunpack.c.h.b16 %v149
    %v204 = vunpack.c.l.b16 %v150
    %v205 = vunpack.c.h.b16 %v150
    %v206 = vunpack.c.l.b16 %v151
    %v207 = vunpack.c.h.b16 %v151
    %v208 = vunpack.c.l.b16 %v152
    %v209 = vunpack.c.h.b16 %v152
    %v210 = vunpack.c.l.b16 %v153
    %v211 = vunpack.c.h.b16 %v153
    %v212 = vunpack.c.l.b16 %v154
    %v213 = vunpack.c.h.b16 %v154
    %v214 = vunpack.c.l.b16 %v155
    %v215 = vunpack.c.h.b16 %v155
    %v216 = vpack.c.b16 %v186, %v184
    %v217 = vpack.c.b16 %v187, %v185
    %v218 = vpack.c.b16 %v190, %v188
    %v219 = vpack.c.b16 %v191, %v189
    %v220 = vpack.c.b16 %v194, %v192
    %v221 = vpack.c.b16 %v195, %v193
    %v222 = vpack.c.b16 %v198, %v196
    %v223 = vpack.c.b16 %v199, %v197
    %v224 = vpack.c.b16 %v202, %v200
    %v225 = vpack.c.b16 %v203, %v201
    %v226 = vpack.c.b16 %v206, %v204
    %v227 = vpack.c.b16 %v207, %v205
    %v228 = vpack.c.b16 %v210, %v208
    %v229 = vpack.c.b16 %v211, %v209
    %v230 = vpack.c.b16 %v214, %v212
    %v231 = vpack.c.b16 %v215, %v213
    %248 = vmatprep.subr.bf16.mxu0 %v217
    %249 = vmatpush1.bf16.msra.mxu0 %v216
    %250 = vmatprep.subr.bf16.mxu0 %v219
    %251 = vmatpush1.bf16.msra.mxu0 %v218
    %252 = vmatprep.subr.bf16.mxu0 %v221
    %253 = vmatpush1.bf16.msra.mxu0 %v220
    %254 = vmatprep.subr.bf16.mxu0 %v223
    %255 = vmatpush1.bf16.msra.mxu0 %v222
    %256 = vmatprep.subr.bf16.mxu0 %v225
    %257 = vmatpush1.bf16.msra.mxu0 %v224
    %258 = vmatprep.subr.bf16.mxu0 %v227
    %259 = vmatpush1.bf16.msra.mxu0 %v226
    %260 = vmatprep.subr.bf16.mxu0 %v229
    %261 = vmatpush1.bf16.msra.mxu0 %v228
    %262 = vmatprep.subr.bf16.mxu0 %v231
    %263 = vmatpush1.bf16.msra.mxu0 %v230
    %264 = vmatprep.subr.bf16.mxu0 0
    %265 = vmatpush1.bf16.msra.mxu0 0
    %266 = vmatprep.subr.bf16.mxu0 0
    %267 = vmatpush1.bf16.msra.mxu0 0
    %268 = vmatprep.subr.bf16.mxu0 0
    %269 = vmatpush1.bf16.msra.mxu0 0
    %270 = vmatprep.subr.bf16.mxu0 0
    %271 = vmatpush1.bf16.msra.mxu0 0
    %272 = vmatprep.subr.bf16.mxu0 0
    %273 = vmatpush1.bf16.msra.mxu0 0
    %274 = vmatprep.subr.bf16.mxu0 0
    %275 = vmatpush1.bf16.msra.mxu0 0
    %276 = vmatprep.subr.bf16.mxu0 0
    %277 = vmatpush1.bf16.msra.mxu0 0
    %278 = vmatprep.subr.bf16.mxu0 0
    %279 = vmatpush1.bf16.msra.mxu0 0
    %280 = vmatprep.mubr.bf16.mxu0 0
    %281 = vmatmul.mubr.bf16.gmra.mrb[0].mxu0 %v139
    %v282 = vpop.f32.mrb[0].mxu0
    %v283 = vadd.f32 %v161, %v282
    %v284 = vpop.f32.mrb[0].mxu0
    %v285 = vadd.f32 %v165, %v284
    %v286 = vpop.f32.mrb[0].mxu0
    %v287 = vpop.f32.mrb[0].mxu0
    %288 = vdwg.mxu0
    %v289 = vmax.f32 %v283, 0.0
    %v290 = vmax.f32 %v285, 0.0
    %v291 = vpack.c.bf16 %v289, %v289
    %v292 = vpack.c.bf16 %v290, %v290
    %v293 = vld [vmem:[#allocation7] sm:$0xff]
    %v294 = vld [vmem:[#allocation7 + $0x8] sm:$0xff]
    %v295 = vld [vmem:[#allocation7 + $0x10] sm:$0xff]
    %v296 = vld [vmem:[#allocation7 + $0x18] sm:$0xff]
    %v297 = vld [vmem:[#allocation7 + $0x20] sm:$0xff]
    %v298 = vld [vmem:[#allocation7 + $0x28] sm:$0xff]
    %v299 = vld [vmem:[#allocation7 + $0x30] sm:$0xff]
    %v300 = vld [vmem:[#allocation7 + $0x38] sm:$0xff]
    %v301 = vld [vmem:[#allocation7 + $0x40] sm:$0xff]
    %v302 = vld [vmem:[#allocation7 + $0x48] sm:$0xff]
    %v303 = vld [vmem:[#allocation7 + $0x50] sm:$0xff]
    %v304 = vld [vmem:[#allocation7 + $0x58] sm:$0xff]
    %v305 = vld [vmem:[#allocation7 + $0x60] sm:$0xff]
    %v306 = vld [vmem:[#allocation7 + $0x68] sm:$0xff]
    %v307 = vld [vmem:[#allocation7 + $0x70] sm:$0xff]
    %v308 = vld [vmem:[#allocation7 + $0x78] sm:$0xff]
    %v309 = vld [vmem:[#allocation7 + $0x80] sm:$0xff]
    %v310 = vld [vmem:[#allocation7 + $0x88] sm:$0xff]
    %v311 = vld [vmem:[#allocation7 + $0x90] sm:$0xff]
    %v312 = vld [vmem:[#allocation7 + $0x98] sm:$0xff]
    %v313 = vld [vmem:[#allocation7 + $0xa0] sm:$0xff]
    %v314 = vld [vmem:[#allocation7 + $0xa8] sm:$0xff]
    %v315 = vld [vmem:[#allocation7 + $0xb0] sm:$0xff]
    %v316 = vld [vmem:[#allocation7 + $0xb8] sm:$0xff]
    %v317 = vld [vmem:[#allocation7 + $0xc0] sm:$0xff]
    %v318 = vld [vmem:[#allocation7 + $0xc8] sm:$0xff]
    %v319 = vld [vmem:[#allocation7 + $0xd0] sm:$0xff]
    %v320 = vld [vmem:[#allocation7 + $0xd8] sm:$0xff]
    %v321 = vld [vmem:[#allocation7 + $0xe0] sm:$0xff]
    %v322 = vld [vmem:[#allocation7 + $0xe8] sm:$0xff]
    %v323 = vld [vmem:[#allocation7 + $0xf0] sm:$0xff]
    %v324 = vld [vmem:[#allocation7 + $0xf8] sm:$0xff]
    %v325 = vld [vmem:[%s4] sm:$0x3]
    %v327 = vlaneseq
    %v328 = vshrl.u32 %v327, 7
    %v329 = vsub.s32 0, %v328
    %v330 = vrot.slane %v325, %v329
    %v331 = vlaneseq
    %v332 = vshrl.u32 %v331, 7
    %v333 = vsub.s32 1, %v332
    %v334 = vrot.slane %v325, %v333
    %v369 = vunpack.c.l.b16 %v293
    %v370 = vunpack.c.h.b16 %v293
    %v371 = vunpack.c.l.b16 %v294
    %v372 = vunpack.c.h.b16 %v294
    %v373 = vunpack.c.l.b16 %v295
    %v374 = vunpack.c.h.b16 %v295
    %v375 = vunpack.c.l.b16 %v296
    %v376 = vunpack.c.h.b16 %v296
    %v377 = vunpack.c.l.b16 %v297
    %v378 = vunpack.c.h.b16 %v297
    %v379 = vunpack.c.l.b16 %v298
    %v380 = vunpack.c.h.b16 %v298
    %v381 = vunpack.c.l.b16 %v299
    %v382 = vunpack.c.h.b16 %v299
    %v383 = vunpack.c.l.b16 %v300
    %v384 = vunpack.c.h.b16 %v300
    %v385 = vunpack.c.l.b16 %v301
    %v386 = vunpack.c.h.b16 %v301
    %v387 = vunpack.c.l.b16 %v302
    %v388 = vunpack.c.h.b16 %v302
    %v389 = vunpack.c.l.b16 %v303
    %v390 = vunpack.c.h.b16 %v303
    %v391 = vunpack.c.l.b16 %v304
    %v392 = vunpack.c.h.b16 %v304
    %v393 = vunpack.c.l.b16 %v305
    %v394 = vunpack.c.h.b16 %v305
    %v395 = vunpack.c.l.b16 %v306
    %v396 = vunpack.c.h.b16 %v306
    %v397 = vunpack.c.l.b16 %v307
    %v398 = vunpack.c.h.b16 %v307
    %v399 = vunpack.c.l.b16 %v308
    %v400 = vunpack.c.h.b16 %v308
    %v401 = vunpack.c.l.b16 %v309
    %v402 = vunpack.c.h.b16 %v309
    %v403 = vunpack.c.l.b16 %v310
    %v404 = vunpack.c.h.b16 %v310
    %v405 = vunpack.c.l.b16 %v311
    %v406 = vunpack.c.h.b16 %v311
    %v407 = vunpack.c.l.b16 %v312
    %v408 = vunpack.c.h.b16 %v312
    %v409 = vunpack.c.l.b16 %v313
    %v410 = vunpack.c.h.b16 %v313
    %v411 = vunpack.c.l.b16 %v314
    %v412 = vunpack.c.h.b16 %v314
    %v413 = vunpack.c.l.b16 %v315
    %v414 = vunpack.c.h.b16 %v315
    %v415 = vunpack.c.l.b16 %v316
    %v416 = vunpack.c.h.b16 %v316
    %v417 = vunpack.c.l.b16 %v317
    %v418 = vunpack.c.h.b16 %v317
    %v419 = vunpack.c.l.b16 %v318
    %v420 = vunpack.c.h.b16 %v318
    %v421 = vunpack.c.l.b16 %v319
    %v422 = vunpack.c.h.b16 %v319
    %v423 = vunpack.c.l.b16 %v320
    %v424 = vunpack.c.h.b16 %v320
    %v425 = vunpack.c.l.b16 %v321
    %v426 = vunpack.c.h.b16 %v321
    %v427 = vunpack.c.l.b16 %v322
    %v428 = vunpack.c.h.b16 %v322
    %v429 = vunpack.c.l.b16 %v323
    %v430 = vunpack.c.h.b16 %v323
    %v431 = vunpack.c.l.b16 %v324
    %v432 = vunpack.c.h.b16 %v324
    %v433 = vpack.c.b16 %v371, %v369
    %v434 = vpack.c.b16 %v372, %v370
    %v435 = vpack.c.b16 %v375, %v373
    %v436 = vpack.c.b16 %v376, %v374
    %v437 = vpack.c.b16 %v379, %v377
    %v438 = vpack.c.b16 %v380, %v378
    %v439 = vpack.c.b16 %v383, %v381
    %v440 = vpack.c.b16 %v384, %v382
    %v441 = vpack.c.b16 %v387, %v385
    %v442 = vpack.c.b16 %v388, %v386
    %v443 = vpack.c.b16 %v391, %v389
    %v444 = vpack.c.b16 %v392, %v390
    %v445 = vpack.c.b16 %v395, %v393
    %v446 = vpack.c.b16 %v396, %v394
    %v447 = vpack.c.b16 %v399, %v397
    %v448 = vpack.c.b16 %v400, %v398
    %v449 = vpack.c.b16 %v403, %v401
    %v450 = vpack.c.b16 %v404, %v402
    %v451 = vpack.c.b16 %v407, %v405
    %v452 = vpack.c.b16 %v408, %v406
    %v453 = vpack.c.b16 %v411, %v409
    %v454 = vpack.c.b16 %v412, %v410
    %v455 = vpack.c.b16 %v415, %v413
    %v456 = vpack.c.b16 %v416, %v414
    %v457 = vpack.c.b16 %v419, %v417
    %v458 = vpack.c.b16 %v420, %v418
    %v459 = vpack.c.b16 %v423, %v421
    %v460 = vpack.c.b16 %v424, %v422
    %v461 = vpack.c.b16 %v427, %v425
    %v462 = vpack.c.b16 %v428, %v426
    %v463 = vpack.c.b16 %v431, %v429
    %v464 = vpack.c.b16 %v432, %v430
    %497 = vmatprep.subr.bf16.mxu0 %v434
    %498 = vmatpush1.bf16.msra.mxu0 %v433
    %499 = vmatprep.subr.bf16.mxu0 %v436
    %500 = vmatpush1.bf16.msra.mxu0 %v435
    %501 = vmatprep.subr.bf16.mxu0 %v438
    %502 = vmatpush1.bf16.msra.mxu0 %v437
    %503 = vmatprep.subr.bf16.mxu0 %v440
    %504 = vmatpush1.bf16.msra.mxu0 %v439
    %505 = vmatprep.subr.bf16.mxu0 %v442
    %506 = vmatpush1.bf16.msra.mxu0 %v441
    %507 = vmatprep.subr.bf16.mxu0 %v444
    %508 = vmatpush1.bf16.msra.mxu0 %v443
    %509 = vmatprep.subr.bf16.mxu0 %v446
    %510 = vmatpush1.bf16.msra.mxu0 %v445
    %511 = vmatprep.subr.bf16.mxu0 %v448
    %512 = vmatpush1.bf16.msra.mxu0 %v447
    %513 = vmatprep.subr.bf16.mxu0 %v450
    %514 = vmatpush1.bf16.msra.mxu0 %v449
    %515 = vmatprep.subr.bf16.mxu0 %v452
    %516 = vmatpush1.bf16.msra.mxu0 %v451
    %517 = vmatprep.subr.bf16.mxu0 %v454
    %518 = vmatpush1.bf16.msra.mxu0 %v453
    %519 = vmatprep.subr.bf16.mxu0 %v456
    %520 = vmatpush1.bf16.msra.mxu0 %v455
    %521 = vmatprep.subr.bf16.mxu0 %v458
    %522 = vmatpush1.bf16.msra.mxu0 %v457
    %523 = vmatprep.subr.bf16.mxu0 %v460
    %524 = vmatpush1.bf16.msra.mxu0 %v459
    %525 = vmatprep.subr.bf16.mxu0 %v462
    %526 = vmatpush1.bf16.msra.mxu0 %v461
    %527 = vmatprep.subr.bf16.mxu0 %v464
    %528 = vmatpush1.bf16.msra.mxu0 %v463
    %529 = vmatprep.mubr.bf16.mxu0 %v292
    %530 = vmatmul.mubr.bf16.gmra.mrb[0].mxu0 %v291
    %v531 = vpop.f32.mrb[0].mxu0
    %v532 = vadd.f32 %v330, %v531
    %v533 = vpop.f32.mrb[0].mxu0
    %v534 = vadd.f32 %v334, %v533
    %v535 = vpop.f32.mrb[0].mxu0
    %v536 = vpop.f32.mrb[0].mxu0
    %537 = vdwg.mxu0
    %v538 = vmax.f32 %v532, 0.0
    %v539 = vmax.f32 %v534, 0.0
    %v540 = vpack.c.bf16 %v538, %v538
    %v541 = vpack.c.bf16 %v539, %v539
    %v542 = vld [vmem:[#allocation8] sm:$0xff]
    %v543 = vld [vmem:[#allocation8 + $0x8] sm:$0xff]
    %v544 = vld [vmem:[#allocation8 + $0x10] sm:$0xff]
    %v545 = vld [vmem:[#allocation8 + $0x18] sm:$0xff]
    %v546 = vld [vmem:[#allocation8 + $0x20] sm:$0xff]
    %v547 = vld [vmem:[#allocation8 + $0x28] sm:$0xff]
    %v548 = vld [vmem:[#allocation8 + $0x30] sm:$0xff]
    %v549 = vld [vmem:[#allocation8 + $0x38] sm:$0xff]
    %v550 = vld [vmem:[#allocation8 + $0x40] sm:$0xff]
    %v551 = vld [vmem:[#allocation8 + $0x48] sm:$0xff]
    %v552 = vld [vmem:[#allocation8 + $0x50] sm:$0xff]
    %v553 = vld [vmem:[#allocation8 + $0x58] sm:$0xff]
    %v554 = vld [vmem:[#allocation8 + $0x60] sm:$0xff]
    %v555 = vld [vmem:[#allocation8 + $0x68] sm:$0xff]
    %v556 = vld [vmem:[#allocation8 + $0x70] sm:$0xff]
    %v557 = vld [vmem:[#allocation8 + $0x78] sm:$0xff]
    %v558 = vld [vmem:[#allocation8 + $0x80] sm:$0xff]
    %v559 = vld [vmem:[#allocation8 + $0x88] sm:$0xff]
    %v560 = vld [vmem:[#allocation8 + $0x90] sm:$0xff]
    %v561 = vld [vmem:[#allocation8 + $0x98] sm:$0xff]
    %v562 = vld [vmem:[#allocation8 + $0xa0] sm:$0xff]
    %v563 = vld [vmem:[#allocation8 + $0xa8] sm:$0xff]
    %v564 = vld [vmem:[#allocation8 + $0xb0] sm:$0xff]
    %v565 = vld [vmem:[#allocation8 + $0xb8] sm:$0xff]
    %v566 = vld [vmem:[#allocation8 + $0xc0] sm:$0xff]
    %v567 = vld [vmem:[#allocation8 + $0xc8] sm:$0xff]
    %v568 = vld [vmem:[#allocation8 + $0xd0] sm:$0xff]
    %v569 = vld [vmem:[#allocation8 + $0xd8] sm:$0xff]
    %v570 = vld [vmem:[#allocation8 + $0xe0] sm:$0xff]
    %v571 = vld [vmem:[#allocation8 + $0xe8] sm:$0xff]
    %v572 = vld [vmem:[#allocation8 + $0xf0] sm:$0xff]
    %v573 = vld [vmem:[#allocation8 + $0xf8] sm:$0xff]
    %v574 = vld [vmem:[%s6] sm:$0x3]
    %v576 = vlaneseq
    %v577 = vshrl.u32 %v576, 7
    %v578 = vsub.s32 0, %v577
    %v579 = vrot.slane %v574, %v578
    %v580 = vlaneseq
    %v581 = vshrl.u32 %v580, 7
    %v582 = vsub.s32 1, %v581
    %v583 = vrot.slane %v574, %v582
    %v618 = vunpack.c.l.b16 %v542
    %v619 = vunpack.c.h.b16 %v542
    %v620 = vunpack.c.l.b16 %v543
    %v621 = vunpack.c.h.b16 %v543
    %v622 = vunpack.c.l.b16 %v544
    %v623 = vunpack.c.h.b16 %v544
    %v624 = vunpack.c.l.b16 %v545
    %v625 = vunpack.c.h.b16 %v545
    %v626 = vunpack.c.l.b16 %v546
    %v627 = vunpack.c.h.b16 %v546
    %v628 = vunpack.c.l.b16 %v547
    %v629 = vunpack.c.h.b16 %v547
    %v630 = vunpack.c.l.b16 %v548
    %v631 = vunpack.c.h.b16 %v548
    %v632 = vunpack.c.l.b16 %v549
    %v633 = vunpack.c.h.b16 %v549
    %v634 = vunpack.c.l.b16 %v550
    %v635 = vunpack.c.h.b16 %v550
    %v636 = vunpack.c.l.b16 %v551
    %v637 = vunpack.c.h.b16 %v551
    %v638 = vunpack.c.l.b16 %v552
    %v639 = vunpack.c.h.b16 %v552
    %v640 = vunpack.c.l.b16 %v553
    %v641 = vunpack.c.h.b16 %v553
    %v642 = vunpack.c.l.b16 %v554
    %v643 = vunpack.c.h.b16 %v554
    %v644 = vunpack.c.l.b16 %v555
    %v645 = vunpack.c.h.b16 %v555
    %v646 = vunpack.c.l.b16 %v556
    %v647 = vunpack.c.h.b16 %v556
    %v648 = vunpack.c.l.b16 %v557
    %v649 = vunpack.c.h.b16 %v557
    %v650 = vunpack.c.l.b16 %v558
    %v651 = vunpack.c.h.b16 %v558
    %v652 = vunpack.c.l.b16 %v559
    %v653 = vunpack.c.h.b16 %v559
    %v654 = vunpack.c.l.b16 %v560
    %v655 = vunpack.c.h.b16 %v560
    %v656 = vunpack.c.l.b16 %v561
    %v657 = vunpack.c.h.b16 %v561
    %v658 = vunpack.c.l.b16 %v562
    %v659 = vunpack.c.h.b16 %v562
    %v660 = vunpack.c.l.b16 %v563
    %v661 = vunpack.c.h.b16 %v563
    %v662 = vunpack.c.l.b16 %v564
    %v663 = vunpack.c.h.b16 %v564
    %v664 = vunpack.c.l.b16 %v565
    %v665 = vunpack.c.h.b16 %v565
    %v666 = vunpack.c.l.b16 %v566
    %v667 = vunpack.c.h.b16 %v566
    %v668 = vunpack.c.l.b16 %v567
    %v669 = vunpack.c.h.b16 %v567
    %v670 = vunpack.c.l.b16 %v568
    %v671 = vunpack.c.h.b16 %v568
    %v672 = vunpack.c.l.b16 %v569
    %v673 = vunpack.c.h.b16 %v569
    %v674 = vunpack.c.l.b16 %v570
    %v675 = vunpack.c.h.b16 %v570
    %v676 = vunpack.c.l.b16 %v571
    %v677 = vunpack.c.h.b16 %v571
    %v678 = vunpack.c.l.b16 %v572
    %v679 = vunpack.c.h.b16 %v572
    %v680 = vunpack.c.l.b16 %v573
    %v681 = vunpack.c.h.b16 %v573
    %v682 = vpack.c.b16 %v620, %v618
    %v683 = vpack.c.b16 %v621, %v619
    %v684 = vpack.c.b16 %v624, %v622
    %v685 = vpack.c.b16 %v625, %v623
    %v686 = vpack.c.b16 %v628, %v626
    %v687 = vpack.c.b16 %v629, %v627
    %v688 = vpack.c.b16 %v632, %v630
    %v689 = vpack.c.b16 %v633, %v631
    %v690 = vpack.c.b16 %v636, %v634
    %v691 = vpack.c.b16 %v637, %v635
    %v692 = vpack.c.b16 %v640, %v638
    %v693 = vpack.c.b16 %v641, %v639
    %v694 = vpack.c.b16 %v644, %v642
    %v695 = vpack.c.b16 %v645, %v643
    %v696 = vpack.c.b16 %v648, %v646
    %v697 = vpack.c.b16 %v649, %v647
    %v698 = vpack.c.b16 %v652, %v650
    %v699 = vpack.c.b16 %v653, %v651
    %v700 = vpack.c.b16 %v656, %v654
    %v701 = vpack.c.b16 %v657, %v655
    %v702 = vpack.c.b16 %v660, %v658
    %v703 = vpack.c.b16 %v661, %v659
    %v704 = vpack.c.b16 %v664, %v662
    %v705 = vpack.c.b16 %v665, %v663
    %v706 = vpack.c.b16 %v668, %v666
    %v707 = vpack.c.b16 %v669, %v667
    %v708 = vpack.c.b16 %v672, %v670
    %v709 = vpack.c.b16 %v673, %v671
    %v710 = vpack.c.b16 %v676, %v674
    %v711 = vpack.c.b16 %v677, %v675
    %v712 = vpack.c.b16 %v680, %v678
    %v713 = vpack.c.b16 %v681, %v679
    %746 = vmatprep.subr.bf16.mxu0 %v683
    %747 = vmatpush1.bf16.msra.mxu0 %v682
    %748 = vmatprep.subr.bf16.mxu0 %v685
    %749 = vmatpush1.bf16.msra.mxu0 %v684
    %750 = vmatprep.subr.bf16.mxu0 %v687
    %751 = vmatpush1.bf16.msra.mxu0 %v686
    %752 = vmatprep.subr.bf16.mxu0 %v689
    %753 = vmatpush1.bf16.msra.mxu0 %v688
    %754 = vmatprep.subr.bf16.mxu0 %v691
    %755 = vmatpush1.bf16.msra.mxu0 %v690
    %756 = vmatprep.subr.bf16.mxu0 %v693
    %757 = vmatpush1.bf16.msra.mxu0 %v692
    %758 = vmatprep.subr.bf16.mxu0 %v695
    %759 = vmatpush1.bf16.msra.mxu0 %v694
    %760 = vmatprep.subr.bf16.mxu0 %v697
    %761 = vmatpush1.bf16.msra.mxu0 %v696
    %762 = vmatprep.subr.bf16.mxu0 %v699
    %763 = vmatpush1.bf16.msra.mxu0 %v698
    %764 = vmatprep.subr.bf16.mxu0 %v701
    %765 = vmatpush1.bf16.msra.mxu0 %v700
    %766 = vmatprep.subr.bf16.mxu0 %v703
    %767 = vmatpush1.bf16.msra.mxu0 %v702
    %768 = vmatprep.subr.bf16.mxu0 %v705
    %769 = vmatpush1.bf16.msra.mxu0 %v704
    %770 = vmatprep.subr.bf16.mxu0 %v707
    %771 = vmatpush1.bf16.msra.mxu0 %v706
    %772 = vmatprep.subr.bf16.mxu0 %v709
    %773 = vmatpush1.bf16.msra.mxu0 %v708
    %774 = vmatprep.subr.bf16.mxu0 %v711
    %775 = vmatpush1.bf16.msra.mxu0 %v710
    %776 = vmatprep.subr.bf16.mxu0 %v713
    %777 = vmatpush1.bf16.msra.mxu0 %v712
    %778 = vmatprep.mubr.bf16.mxu0 %v541
    %779 = vmatmul.mubr.bf16.gmra.mrb[0].mxu0 %v540
    %v780 = vpop.f32.mrb[0].mxu0
    %v781 = vadd.f32 %v579, %v780
    %v782 = vpop.f32.mrb[0].mxu0
    %v783 = vadd.f32 %v583, %v782
    %v784 = vpop.f32.mrb[0].mxu0
    %v785 = vpop.f32.mrb[0].mxu0
    %786 = vdwg.mxu0
    %v787 = vmax.f32 %v781, 0.0
    %v788 = vmax.f32 %v783, 0.0
    %v789 = vpack.c.bf16 %v787, %v787
    %v790 = vpack.c.bf16 %v788, %v788
    %v791 = vld [vmem:[#allocation10] sm:$0xff]
    %v792 = vld [vmem:[#allocation10 + $0x8] sm:$0xff]
    %v793 = vld [vmem:[#allocation10 + $0x10] sm:$0xff]
    %v794 = vld [vmem:[#allocation10 + $0x18] sm:$0xff]
    %v795 = vld [vmem:[#allocation10 + $0x20] sm:$0xff]
    %v796 = vld [vmem:[#allocation10 + $0x28] sm:$0xff]
    %v797 = vld [vmem:[#allocation10 + $0x30] sm:$0xff]
    %v798 = vld [vmem:[#allocation10 + $0x38] sm:$0xff]
    %v799 = vld [vmem:[#allocation10 + $0x40] sm:$0xff]
    %v800 = vld [vmem:[#allocation10 + $0x48] sm:$0xff]
    %v801 = vld [vmem:[#allocation10 + $0x50] sm:$0xff]
    %v802 = vld [vmem:[#allocation10 + $0x58] sm:$0xff]
    %v803 = vld [vmem:[#allocation10 + $0x60] sm:$0xff]
    %v804 = vld [vmem:[#allocation10 + $0x68] sm:$0xff]
    %v805 = vld [vmem:[#allocation10 + $0x70] sm:$0xff]
    %v806 = vld [vmem:[#allocation10 + $0x78] sm:$0xff]
    %v807 = vld [vmem:[#allocation10 + $0x80] sm:$0xff]
    %v808 = vld [vmem:[#allocation10 + $0x88] sm:$0xff]
    %v809 = vld [vmem:[#allocation10 + $0x90] sm:$0xff]
    %v810 = vld [vmem:[#allocation10 + $0x98] sm:$0xff]
    %v811 = vld [vmem:[#allocation10 + $0xa0] sm:$0xff]
    %v812 = vld [vmem:[#allocation10 + $0xa8] sm:$0xff]
    %v813 = vld [vmem:[#allocation10 + $0xb0] sm:$0xff]
    %v814 = vld [vmem:[#allocation10 + $0xb8] sm:$0xff]
    %v815 = vld [vmem:[#allocation10 + $0xc0] sm:$0xff]
    %v816 = vld [vmem:[#allocation10 + $0xc8] sm:$0xff]
    %v817 = vld [vmem:[#allocation10 + $0xd0] sm:$0xff]
    %v818 = vld [vmem:[#allocation10 + $0xd8] sm:$0xff]
    %v819 = vld [vmem:[#allocation10 + $0xe0] sm:$0xff]
    %v820 = vld [vmem:[#allocation10 + $0xe8] sm:$0xff]
    %v821 = vld [vmem:[#allocation10 + $0xf0] sm:$0xff]
    %v822 = vld [vmem:[#allocation10 + $0xf8] sm:$0xff]
    %v823 = vld [vmem:[%s8] sm:$0x3]
    %v825 = vlaneseq
    %v826 = vshrl.u32 %v825, 7
    %v827 = vsub.s32 0, %v826
    %v828 = vrot.slane %v823, %v827
    %v829 = vlaneseq
    %v830 = vshrl.u32 %v829, 7
    %v831 = vsub.s32 1, %v830
    %v832 = vrot.slane %v823, %v831
    %v867 = vunpack.c.l.b16 %v791
    %v868 = vunpack.c.h.b16 %v791
    %v869 = vunpack.c.l.b16 %v792
    %v870 = vunpack.c.h.b16 %v792
    %v871 = vunpack.c.l.b16 %v793
    %v872 = vunpack.c.h.b16 %v793
    %v873 = vunpack.c.l.b16 %v794
    %v874 = vunpack.c.h.b16 %v794
    %v875 = vunpack.c.l.b16 %v795
    %v876 = vunpack.c.h.b16 %v795
    %v877 = vunpack.c.l.b16 %v796
    %v878 = vunpack.c.h.b16 %v796
    %v879 = vunpack.c.l.b16 %v797
    %v880 = vunpack.c.h.b16 %v797
    %v881 = vunpack.c.l.b16 %v798
    %v882 = vunpack.c.h.b16 %v798
    %v883 = vunpack.c.l.b16 %v799
    %v884 = vunpack.c.h.b16 %v799
    %v885 = vunpack.c.l.b16 %v800
    %v886 = vunpack.c.h.b16 %v800
    %v887 = vunpack.c.l.b16 %v801
    %v888 = vunpack.c.h.b16 %v801
    %v889 = vunpack.c.l.b16 %v802
    %v890 = vunpack.c.h.b16 %v802
    %v891 = vunpack.c.l.b16 %v803
    %v892 = vunpack.c.h.b16 %v803
    %v893 = vunpack.c.l.b16 %v804
    %v894 = vunpack.c.h.b16 %v804
    %v895 = vunpack.c.l.b16 %v805
    %v896 = vunpack.c.h.b16 %v805
    %v897 = vunpack.c.l.b16 %v806
    %v898 = vunpack.c.h.b16 %v806
    %v899 = vunpack.c.l.b16 %v807
    %v900 = vunpack.c.h.b16 %v807
    %v901 = vunpack.c.l.b16 %v808
    %v902 = vunpack.c.h.b16 %v808
    %v903 = vunpack.c.l.b16 %v809
    %v904 = vunpack.c.h.b16 %v809
    %v905 = vunpack.c.l.b16 %v810
    %v906 = vunpack.c.h.b16 %v810
    %v907 = vunpack.c.l.b16 %v811
    %v908 = vunpack.c.h.b16 %v811
    %v909 = vunpack.c.l.b16 %v812
    %v910 = vunpack.c.h.b16 %v812
    %v911 = vunpack.c.l.b16 %v813
    %v912 = vunpack.c.h.b16 %v813
    %v913 = vunpack.c.l.b16 %v814
    %v914 = vunpack.c.h.b16 %v814
    %v915 = vunpack.c.l.b16 %v815
    %v916 = vunpack.c.h.b16 %v815
    %v917 = vunpack.c.l.b16 %v816
    %v918 = vunpack.c.h.b16 %v816
    %v919 = vunpack.c.l.b16 %v817
    %v920 = vunpack.c.h.b16 %v817
    %v921 = vunpack.c.l.b16 %v818
    %v922 = vunpack.c.h.b16 %v818
    %v923 = vunpack.c.l.b16 %v819
    %v924 = vunpack.c.h.b16 %v819
    %v925 = vunpack.c.l.b16 %v820
    %v926 = vunpack.c.h.b16 %v820
    %v927 = vunpack.c.l.b16 %v821
    %v928 = vunpack.c.h.b16 %v821
    %v929 = vunpack.c.l.b16 %v822
    %v930 = vunpack.c.h.b16 %v822
    %v931 = vpack.c.b16 %v869, %v867
    %v932 = vpack.c.b16 %v870, %v868
    %v933 = vpack.c.b16 %v873, %v871
    %v934 = vpack.c.b16 %v874, %v872
    %v935 = vpack.c.b16 %v877, %v875
    %v936 = vpack.c.b16 %v878, %v876
    %v937 = vpack.c.b16 %v881, %v879
    %v938 = vpack.c.b16 %v882, %v880
    %v939 = vpack.c.b16 %v885, %v883
    %v940 = vpack.c.b16 %v886, %v884
    %v941 = vpack.c.b16 %v889, %v887
    %v942 = vpack.c.b16 %v890, %v888
    %v943 = vpack.c.b16 %v893, %v891
    %v944 = vpack.c.b16 %v894, %v892
    %v945 = vpack.c.b16 %v897, %v895
    %v946 = vpack.c.b16 %v898, %v896
    %v947 = vpack.c.b16 %v901, %v899
    %v948 = vpack.c.b16 %v902, %v900
    %v949 = vpack.c.b16 %v905, %v903
    %v950 = vpack.c.b16 %v906, %v904
    %v951 = vpack.c.b16 %v909, %v907
    %v952 = vpack.c.b16 %v910, %v908
    %v953 = vpack.c.b16 %v913, %v911
    %v954 = vpack.c.b16 %v914, %v912
    %v955 = vpack.c.b16 %v917, %v915
    %v956 = vpack.c.b16 %v918, %v916
    %v957 = vpack.c.b16 %v921, %v919
    %v958 = vpack.c.b16 %v922, %v920
    %v959 = vpack.c.b16 %v925, %v923
    %v960 = vpack.c.b16 %v926, %v924
    %v961 = vpack.c.b16 %v929, %v927
    %v962 = vpack.c.b16 %v930, %v928
    %995 = vmatprep.subr.bf16.mxu0 %v932
    %996 = vmatpush1.bf16.msra.mxu0 %v931
    %997 = vmatprep.subr.bf16.mxu0 %v934
    %998 = vmatpush1.bf16.msra.mxu0 %v933
    %999 = vmatprep.subr.bf16.mxu0 %v936
    %1000 = vmatpush1.bf16.msra.mxu0 %v935
    %1001 = vmatprep.subr.bf16.mxu0 %v938
    %1002 = vmatpush1.bf16.msra.mxu0 %v937
    %1003 = vmatprep.subr.bf16.mxu0 %v940
    %1004 = vmatpush1.bf16.msra.mxu0 %v939
    %1005 = vmatprep.subr.bf16.mxu0 %v942
    %1006 = vmatpush1.bf16.msra.mxu0 %v941
    %1007 = vmatprep.subr.bf16.mxu0 %v944
    %1008 = vmatpush1.bf16.msra.mxu0 %v943
    %1009 = vmatprep.subr.bf16.mxu0 %v946
    %1010 = vmatpush1.bf16.msra.mxu0 %v945
    %1011 = vmatprep.subr.bf16.mxu0 %v948
    %1012 = vmatpush1.bf16.msra.mxu0 %v947
    %1013 = vmatprep.subr.bf16.mxu0 %v950
    %1014 = vmatpush1.bf16.msra.mxu0 %v949
    %1015 = vmatprep.subr.bf16.mxu0 %v952
    %1016 = vmatpush1.bf16.msra.mxu0 %v951
    %1017 = vmatprep.subr.bf16.mxu0 %v954
    %1018 = vmatpush1.bf16.msra.mxu0 %v953
    %1019 = vmatprep.subr.bf16.mxu0 %v956
    %1020 = vmatpush1.bf16.msra.mxu0 %v955
    %1021 = vmatprep.subr.bf16.mxu0 %v958
    %1022 = vmatpush1.bf16.msra.mxu0 %v957
    %1023 = vmatprep.subr.bf16.mxu0 %v960
    %1024 = vmatpush1.bf16.msra.mxu0 %v959
    %1025 = vmatprep.subr.bf16.mxu0 %v962
    %1026 = vmatpush1.bf16.msra.mxu0 %v961
    %1027 = vmatprep.mubr.bf16.mxu0 %v790
    %1028 = vmatmul.mubr.bf16.gmra.mrb[0].mxu0 %v789
    %v1029 = vpop.f32.mrb[0].mxu0
    %v1030 = vadd.f32 %v828, %v1029
    %v1031 = vpop.f32.mrb[0].mxu0
    %v1032 = vadd.f32 %v832, %v1031
    %v1033 = vpop.f32.mrb[0].mxu0
    %v1034 = vpop.f32.mrb[0].mxu0
    %1035 = vdwg.mxu0
    %v1036 = vmax.f32 %v1030, 0.0
    %v1037 = vmax.f32 %v1032, 0.0
    %v1038 = vpack.c.bf16 %v1036, %v1036
    %v1039 = vpack.c.bf16 %v1037, %v1037
    %v1040 = vld [vmem:[#allocation11] sm:$0xff]
    %v1041 = vld [vmem:[#allocation11 + $0x8] sm:$0xff]
    %v1042 = vld [vmem:[#allocation11 + $0x10] sm:$0xff]
    %v1043 = vld [vmem:[#allocation11 + $0x18] sm:$0xff]
    %v1044 = vld [vmem:[#allocation11 + $0x20] sm:$0xff]
    %v1045 = vld [vmem:[#allocation11 + $0x28] sm:$0xff]
    %v1046 = vld [vmem:[#allocation11 + $0x30] sm:$0xff]
    %v1047 = vld [vmem:[#allocation11 + $0x38] sm:$0xff]
    %v1048 = vld [vmem:[#allocation11 + $0x40] sm:$0xff]
    %v1049 = vld [vmem:[#allocation11 + $0x48] sm:$0xff]
    %v1050 = vld [vmem:[#allocation11 + $0x50] sm:$0xff]
    %v1051 = vld [vmem:[#allocation11 + $0x58] sm:$0xff]
    %v1052 = vld [vmem:[#allocation11 + $0x60] sm:$0xff]
    %v1053 = vld [vmem:[#allocation11 + $0x68] sm:$0xff]
    %v1054 = vld [vmem:[#allocation11 + $0x70] sm:$0xff]
    %v1055 = vld [vmem:[#allocation11 + $0x78] sm:$0xff]
    %v1056 = vld [vmem:[#allocation11 + $0x80] sm:$0xff]
    %v1057 = vld [vmem:[#allocation11 + $0x88] sm:$0xff]
    %v1058 = vld [vmem:[#allocation11 + $0x90] sm:$0xff]
    %v1059 = vld [vmem:[#allocation11 + $0x98] sm:$0xff]
    %v1060 = vld [vmem:[#allocation11 + $0xa0] sm:$0xff]
    %v1061 = vld [vmem:[#allocation11 + $0xa8] sm:$0xff]
    %v1062 = vld [vmem:[#allocation11 + $0xb0] sm:$0xff]
    %v1063 = vld [vmem:[#allocation11 + $0xb8] sm:$0xff]
    %v1064 = vld [vmem:[#allocation11 + $0xc0] sm:$0xff]
    %v1065 = vld [vmem:[#allocation11 + $0xc8] sm:$0xff]
    %v1066 = vld [vmem:[#allocation11 + $0xd0] sm:$0xff]
    %v1067 = vld [vmem:[#allocation11 + $0xd8] sm:$0xff]
    %v1068 = vld [vmem:[#allocation11 + $0xe0] sm:$0xff]
    %v1069 = vld [vmem:[#allocation11 + $0xe8] sm:$0xff]
    %v1070 = vld [vmem:[#allocation11 + $0xf0] sm:$0xff]
    %v1071 = vld [vmem:[#allocation11 + $0xf8] sm:$0xff]
    %v1072 = vld [vmem:[%s10] sm:$0x3]
    %v1074 = vlaneseq
    %v1075 = vshrl.u32 %v1074, 7
    %v1076 = vsub.s32 0, %v1075
    %v1077 = vrot.slane %v1072, %v1076
    %v1078 = vlaneseq
    %v1079 = vshrl.u32 %v1078, 7
    %v1080 = vsub.s32 1, %v1079
    %v1081 = vrot.slane %v1072, %v1080
    %v1116 = vunpack.c.l.b16 %v1040
    %v1117 = vunpack.c.h.b16 %v1040
    %v1118 = vunpack.c.l.b16 %v1041
    %v1119 = vunpack.c.h.b16 %v1041
    %v1120 = vunpack.c.l.b16 %v1042
    %v1121 = vunpack.c.h.b16 %v1042
    %v1122 = vunpack.c.l.b16 %v1043
    %v1123 = vunpack.c.h.b16 %v1043
    %v1124 = vunpack.c.l.b16 %v1044
    %v1125 = vunpack.c.h.b16 %v1044
    %v1126 = vunpack.c.l.b16 %v1045
    %v1127 = vunpack.c.h.b16 %v1045
    %v1128 = vunpack.c.l.b16 %v1046
    %v1129 = vunpack.c.h.b16 %v1046
    %v1130 = vunpack.c.l.b16 %v1047
    %v1131 = vunpack.c.h.b16 %v1047
    %v1132 = vunpack.c.l.b16 %v1048
    %v1133 = vunpack.c.h.b16 %v1048
    %v1134 = vunpack.c.l.b16 %v1049
    %v1135 = vunpack.c.h.b16 %v1049
    %v1136 = vunpack.c.l.b16 %v1050
    %v1137 = vunpack.c.h.b16 %v1050
    %v1138 = vunpack.c.l.b16 %v1051
    %v1139 = vunpack.c.h.b16 %v1051
    %v1140 = vunpack.c.l.b16 %v1052
    %v1141 = vunpack.c.h.b16 %v1052
    %v1142 = vunpack.c.l.b16 %v1053
    %v1143 = vunpack.c.h.b16 %v1053
    %v1144 = vunpack.c.l.b16 %v1054
    %v1145 = vunpack.c.h.b16 %v1054
    %v1146 = vunpack.c.l.b16 %v1055
    %v1147 = vunpack.c.h.b16 %v1055
    %v1148 = vunpack.c.l.b16 %v1056
    %v1149 = vunpack.c.h.b16 %v1056
    %v1150 = vunpack.c.l.b16 %v1057
    %v1151 = vunpack.c.h.b16 %v1057
    %v1152 = vunpack.c.l.b16 %v1058
    %v1153 = vunpack.c.h.b16 %v1058
    %v1154 = vunpack.c.l.b16 %v1059
    %v1155 = vunpack.c.h.b16 %v1059
    %v1156 = vunpack.c.l.b16 %v1060
    %v1157 = vunpack.c.h.b16 %v1060
    %v1158 = vunpack.c.l.b16 %v1061
    %v1159 = vunpack.c.h.b16 %v1061
    %v1160 = vunpack.c.l.b16 %v1062
    %v1161 = vunpack.c.h.b16 %v1062
    %v1162 = vunpack.c.l.b16 %v1063
    %v1163 = vunpack.c.h.b16 %v1063
    %v1164 = vunpack.c.l.b16 %v1064
    %v1165 = vunpack.c.h.b16 %v1064
    %v1166 = vunpack.c.l.b16 %v1065
    %v1167 = vunpack.c.h.b16 %v1065
    %v1168 = vunpack.c.l.b16 %v1066
    %v1169 = vunpack.c.h.b16 %v1066
    %v1170 = vunpack.c.l.b16 %v1067
    %v1171 = vunpack.c.h.b16 %v1067
    %v1172 = vunpack.c.l.b16 %v1068
    %v1173 = vunpack.c.h.b16 %v1068
    %v1174 = vunpack.c.l.b16 %v1069
    %v1175 = vunpack.c.h.b16 %v1069
    %v1176 = vunpack.c.l.b16 %v1070
    %v1177 = vunpack.c.h.b16 %v1070
    %v1178 = vunpack.c.l.b16 %v1071
    %v1179 = vunpack.c.h.b16 %v1071
    %v1180 = vpack.c.b16 %v1118, %v1116
    %v1181 = vpack.c.b16 %v1119, %v1117
    %v1182 = vpack.c.b16 %v1122, %v1120
    %v1183 = vpack.c.b16 %v1123, %v1121
    %v1184 = vpack.c.b16 %v1126, %v1124
    %v1185 = vpack.c.b16 %v1127, %v1125
    %v1186 = vpack.c.b16 %v1130, %v1128
    %v1187 = vpack.c.b16 %v1131, %v1129
    %v1188 = vpack.c.b16 %v1134, %v1132
    %v1189 = vpack.c.b16 %v1135, %v1133
    %v1190 = vpack.c.b16 %v1138, %v1136
    %v1191 = vpack.c.b16 %v1139, %v1137
    %v1192 = vpack.c.b16 %v1142, %v1140
    %v1193 = vpack.c.b16 %v1143, %v1141
    %v1194 = vpack.c.b16 %v1146, %v1144
    %v1195 = vpack.c.b16 %v1147, %v1145
    %v1196 = vpack.c.b16 %v1150, %v1148
    %v1197 = vpack.c.b16 %v1151, %v1149
    %v1198 = vpack.c.b16 %v1154, %v1152
    %v1199 = vpack.c.b16 %v1155, %v1153
    %v1200 = vpack.c.b16 %v1158, %v1156
    %v1201 = vpack.c.b16 %v1159, %v1157
    %v1202 = vpack.c.b16 %v1162, %v1160
    %v1203 = vpack.c.b16 %v1163, %v1161
    %v1204 = vpack.c.b16 %v1166, %v1164
    %v1205 = vpack.c.b16 %v1167, %v1165
    %v1206 = vpack.c.b16 %v1170, %v1168
    %v1207 = vpack.c.b16 %v1171, %v1169
    %v1208 = vpack.c.b16 %v1174, %v1172
    %v1209 = vpack.c.b16 %v1175, %v1173
    %v1210 = vpack.c.b16 %v1178, %v1176
    %v1211 = vpack.c.b16 %v1179, %v1177
    %1244 = vmatprep.subr.bf16.mxu0 %v1181
    %1245 = vmatpush1.bf16.msra.mxu0 %v1180
    %1246 = vmatprep.subr.bf16.mxu0 %v1183
    %1247 = vmatpush1.bf16.msra.mxu0 %v1182
    %1248 = vmatprep.subr.bf16.mxu0 %v1185
    %1249 = vmatpush1.bf16.msra.mxu0 %v1184
    %1250 = vmatprep.subr.bf16.mxu0 %v1187
    %1251 = vmatpush1.bf16.msra.mxu0 %v1186
    %1252 = vmatprep.subr.bf16.mxu0 %v1189
    %1253 = vmatpush1.bf16.msra.mxu0 %v1188
    %1254 = vmatprep.subr.bf16.mxu0 %v1191
    %1255 = vmatpush1.bf16.msra.mxu0 %v1190
    %1256 = vmatprep.subr.bf16.mxu0 %v1193
    %1257 = vmatpush1.bf16.msra.mxu0 %v1192
    %1258 = vmatprep.subr.bf16.mxu0 %v1195
    %1259 = vmatpush1.bf16.msra.mxu0 %v1194
    %1260 = vmatprep.subr.bf16.mxu0 %v1197
    %1261 = vmatpush1.bf16.msra.mxu0 %v1196
    %1262 = vmatprep.subr.bf16.mxu0 %v1199
    %1263 = vmatpush1.bf16.msra.mxu0 %v1198
    %1264 = vmatprep.subr.bf16.mxu0 %v1201
    %1265 = vmatpush1.bf16.msra.mxu0 %v1200
    %1266 = vmatprep.subr.bf16.mxu0 %v1203
    %1267 = vmatpush1.bf16.msra.mxu0 %v1202
    %1268 = vmatprep.subr.bf16.mxu0 %v1205
    %1269 = vmatpush1.bf16.msra.mxu0 %v1204
    %1270 = vmatprep.subr.bf16.mxu0 %v1207
    %1271 = vmatpush1.bf16.msra.mxu0 %v1206
    %1272 = vmatprep.subr.bf16.mxu0 %v1209
    %1273 = vmatpush1.bf16.msra.mxu0 %v1208
    %1274 = vmatprep.subr.bf16.mxu0 %v1211
    %1275 = vmatpush1.bf16.msra.mxu0 %v1210
    %1276 = vmatprep.mubr.bf16.mxu0 %v1039
    %1277 = vmatmul.mubr.bf16.gmra.mrb[0].mxu0 %v1038
    %v1278 = vpop.f32.mrb[0].mxu0
    %v1279 = vadd.f32 %v1077, %v1278
    %v1280 = vpop.f32.mrb[0].mxu0
    %v1281 = vadd.f32 %v1081, %v1280
    %v1282 = vpop.f32.mrb[0].mxu0
    %v1283 = vpop.f32.mrb[0].mxu0
    %1284 = vdwg.mxu0
    %v1285 = vmax.f32 %v1279, 0.0
    %v1286 = vmax.f32 %v1281, 0.0
    %v1287 = vpack.c.bf16 %v1285, %v1285
    %v1288 = vpack.c.bf16 %v1286, %v1286
    %v1289 = vld [vmem:[#allocation13] sm:$0xff]
    %v1290 = vld [vmem:[#allocation13 + $0x8] sm:$0xff]
    %v1291 = vld [vmem:[#allocation13 + $0x10] sm:$0xff]
    %v1292 = vld [vmem:[#allocation13 + $0x18] sm:$0xff]
    %v1293 = vld [vmem:[#allocation13 + $0x20] sm:$0xff]
    %v1294 = vld [vmem:[#allocation13 + $0x28] sm:$0xff]
    %v1295 = vld [vmem:[#allocation13 + $0x30] sm:$0xff]
    %v1296 = vld [vmem:[#allocation13 + $0x38] sm:$0xff]
    %v1297 = vld [vmem:[#allocation13 + $0x40] sm:$0xff]
    %v1298 = vld [vmem:[#allocation13 + $0x48] sm:$0xff]
    %v1299 = vld [vmem:[#allocation13 + $0x50] sm:$0xff]
    %v1300 = vld [vmem:[#allocation13 + $0x58] sm:$0xff]
    %v1301 = vld [vmem:[#allocation13 + $0x60] sm:$0xff]
    %v1302 = vld [vmem:[#allocation13 + $0x68] sm:$0xff]
    %v1303 = vld [vmem:[#allocation13 + $0x70] sm:$0xff]
    %v1304 = vld [vmem:[#allocation13 + $0x78] sm:$0xff]
    %v1305 = vld [vmem:[#allocation13 + $0x80] sm:$0xff]
    %v1306 = vld [vmem:[#allocation13 + $0x88] sm:$0xff]
    %v1307 = vld [vmem:[#allocation13 + $0x90] sm:$0xff]
    %v1308 = vld [vmem:[#allocation13 + $0x98] sm:$0xff]
    %v1309 = vld [vmem:[#allocation13 + $0xa0] sm:$0xff]
    %v1310 = vld [vmem:[#allocation13 + $0xa8] sm:$0xff]
    %v1311 = vld [vmem:[#allocation13 + $0xb0] sm:$0xff]
    %v1312 = vld [vmem:[#allocation13 + $0xb8] sm:$0xff]
    %v1313 = vld [vmem:[#allocation13 + $0xc0] sm:$0xff]
    %v1314 = vld [vmem:[#allocation13 + $0xc8] sm:$0xff]
    %v1315 = vld [vmem:[#allocation13 + $0xd0] sm:$0xff]
    %v1316 = vld [vmem:[#allocation13 + $0xd8] sm:$0xff]
    %v1317 = vld [vmem:[#allocation13 + $0xe0] sm:$0xff]
    %v1318 = vld [vmem:[#allocation13 + $0xe8] sm:$0xff]
    %v1319 = vld [vmem:[#allocation13 + $0xf0] sm:$0xff]
    %v1320 = vld [vmem:[#allocation13 + $0xf8] sm:$0xff]
    %v1321 = vld [vmem:[%s12] sm:$0x3]
    %v1323 = vlaneseq
    %v1324 = vshrl.u32 %v1323, 7
    %v1325 = vsub.s32 0, %v1324
    %v1326 = vrot.slane %v1321, %v1325
    %v1327 = vlaneseq
    %v1328 = vshrl.u32 %v1327, 7
    %v1329 = vsub.s32 1, %v1328
    %v1330 = vrot.slane %v1321, %v1329
    %v1365 = vunpack.c.l.b16 %v1289
    %v1366 = vunpack.c.h.b16 %v1289
    %v1367 = vunpack.c.l.b16 %v1290
    %v1368 = vunpack.c.h.b16 %v1290
    %v1369 = vunpack.c.l.b16 %v1291
    %v1370 = vunpack.c.h.b16 %v1291
    %v1371 = vunpack.c.l.b16 %v1292
    %v1372 = vunpack.c.h.b16 %v1292
    %v1373 = vunpack.c.l.b16 %v1293
    %v1374 = vunpack.c.h.b16 %v1293
    %v1375 = vunpack.c.l.b16 %v1294
    %v1376 = vunpack.c.h.b16 %v1294
    %v1377 = vunpack.c.l.b16 %v1295
    %v1378 = vunpack.c.h.b16 %v1295
    %v1379 = vunpack.c.l.b16 %v1296
    %v1380 = vunpack.c.h.b16 %v1296
    %v1381 = vunpack.c.l.b16 %v1297
    %v1382 = vunpack.c.h.b16 %v1297
    %v1383 = vunpack.c.l.b16 %v1298
    %v1384 = vunpack.c.h.b16 %v1298
    %v1385 = vunpack.c.l.b16 %v1299
    %v1386 = vunpack.c.h.b16 %v1299
    %v1387 = vunpack.c.l.b16 %v1300
    %v1388 = vunpack.c.h.b16 %v1300
    %v1389 = vunpack.c.l.b16 %v1301
    %v1390 = vunpack.c.h.b16 %v1301
    %v1391 = vunpack.c.l.b16 %v1302
    %v1392 = vunpack.c.h.b16 %v1302
    %v1393 = vunpack.c.l.b16 %v1303
    %v1394 = vunpack.c.h.b16 %v1303
    %v1395 = vunpack.c.l.b16 %v1304
    %v1396 = vunpack.c.h.b16 %v1304
    %v1397 = vunpack.c.l.b16 %v1305
    %v1398 = vunpack.c.h.b16 %v1305
    %v1399 = vunpack.c.l.b16 %v1306
    %v1400 = vunpack.c.h.b16 %v1306
    %v1401 = vunpack.c.l.b16 %v1307
    %v1402 = vunpack.c.h.b16 %v1307
    %v1403 = vunpack.c.l.b16 %v1308
    %v1404 = vunpack.c.h.b16 %v1308
    %v1405 = vunpack.c.l.b16 %v1309
    %v1406 = vunpack.c.h.b16 %v1309
    %v1407 = vunpack.c.l.b16 %v1310
    %v1408 = vunpack.c.h.b16 %v1310
    %v1409 = vunpack.c.l.b16 %v1311
    %v1410 = vunpack.c.h.b16 %v1311
    %v1411 = vunpack.c.l.b16 %v1312
    %v1412 = vunpack.c.h.b16 %v1312
    %v1413 = vunpack.c.l.b16 %v1313
    %v1414 = vunpack.c.h.b16 %v1313
    %v1415 = vunpack.c.l.b16 %v1314
    %v1416 = vunpack.c.h.b16 %v1314
    %v1417 = vunpack.c.l.b16 %v1315
    %v1418 = vunpack.c.h.b16 %v1315
    %v1419 = vunpack.c.l.b16 %v1316
    %v1420 = vunpack.c.h.b16 %v1316
    %v1421 = vunpack.c.l.b16 %v1317
    %v1422 = vunpack.c.h.b16 %v1317
    %v1423 = vunpack.c.l.b16 %v1318
    %v1424 = vunpack.c.h.b16 %v1318
    %v1425 = vunpack.c.l.b16 %v1319
    %v1426 = vunpack.c.h.b16 %v1319
    %v1427 = vunpack.c.l.b16 %v1320
    %v1428 = vunpack.c.h.b16 %v1320
    %v1429 = vpack.c.b16 %v1367, %v1365
    %v1430 = vpack.c.b16 %v1368, %v1366
    %v1431 = vpack.c.b16 %v1371, %v1369
    %v1432 = vpack.c.b16 %v1372, %v1370
    %v1433 = vpack.c.b16 %v1375, %v1373
    %v1434 = vpack.c.b16 %v1376, %v1374
    %v1435 = vpack.c.b16 %v1379, %v1377
    %v1436 = vpack.c.b16 %v1380, %v1378
    %v1437 = vpack.c.b16 %v1383, %v1381
    %v1438 = vpack.c.b16 %v1384, %v1382
    %v1439 = vpack.c.b16 %v1387, %v1385
    %v1440 = vpack.c.b16 %v1388, %v1386
    %v1441 = vpack.c.b16 %v1391, %v1389
    %v1442 = vpack.c.b16 %v1392, %v1390
    %v1443 = vpack.c.b16 %v1395, %v1393
    %v1444 = vpack.c.b16 %v1396, %v1394
    %v1445 = vpack.c.b16 %v1399, %v1397
    %v1446 = vpack.c.b16 %v1400, %v1398
    %v1447 = vpack.c.b16 %v1403, %v1401
    %v1448 = vpack.c.b16 %v1404, %v1402
    %v1449 = vpack.c.b16 %v1407, %v1405
    %v1450 = vpack.c.b16 %v1408, %v1406
    %v1451 = vpack.c.b16 %v1411, %v1409
    %v1452 = vpack.c.b16 %v1412, %v1410
    %v1453 = vpack.c.b16 %v1415, %v1413
    %v1454 = vpack.c.b16 %v1416, %v1414
    %v1455 = vpack.c.b16 %v1419, %v1417
    %v1456 = vpack.c.b16 %v1420, %v1418
    %v1457 = vpack.c.b16 %v1423, %v1421
    %v1458 = vpack.c.b16 %v1424, %v1422
    %v1459 = vpack.c.b16 %v1427, %v1425
    %v1460 = vpack.c.b16 %v1428, %v1426
    %1493 = vmatprep.subr.bf16.mxu0 %v1430
    %1494 = vmatpush1.bf16.msra.mxu0 %v1429
    %1495 = vmatprep.subr.bf16.mxu0 %v1432
    %1496 = vmatpush1.bf16.msra.mxu0 %v1431
    %1497 = vmatprep.subr.bf16.mxu0 %v1434
    %1498 = vmatpush1.bf16.msra.mxu0 %v1433
    %1499 = vmatprep.subr.bf16.mxu0 %v1436
    %1500 = vmatpush1.bf16.msra.mxu0 %v1435
    %1501 = vmatprep.subr.bf16.mxu0 %v1438
    %1502 = vmatpush1.bf16.msra.mxu0 %v1437
    %1503 = vmatprep.subr.bf16.mxu0 %v1440
    %1504 = vmatpush1.bf16.msra.mxu0 %v1439
    %1505 = vmatprep.subr.bf16.mxu0 %v1442
    %1506 = vmatpush1.bf16.msra.mxu0 %v1441
    %1507 = vmatprep.subr.bf16.mxu0 %v1444
    %1508 = vmatpush1.bf16.msra.mxu0 %v1443
    %1509 = vmatprep.subr.bf16.mxu0 %v1446
    %1510 = vmatpush1.bf16.msra.mxu0 %v1445
    %1511 = vmatprep.subr.bf16.mxu0 %v1448
    %1512 = vmatpush1.bf16.msra.mxu0 %v1447
    %1513 = vmatprep.subr.bf16.mxu0 %v1450
    %1514 = vmatpush1.bf16.msra.mxu0 %v1449
    %1515 = vmatprep.subr.bf16.mxu0 %v1452
    %1516 = vmatpush1.bf16.msra.mxu0 %v1451
    %1517 = vmatprep.subr.bf16.mxu0 %v1454
    %1518 = vmatpush1.bf16.msra.mxu0 %v1453
    %1519 = vmatprep.subr.bf16.mxu0 %v1456
    %1520 = vmatpush1.bf16.msra.mxu0 %v1455
    %1521 = vmatprep.subr.bf16.mxu0 %v1458
    %1522 = vmatpush1.bf16.msra.mxu0 %v1457
    %1523 = vmatprep.subr.bf16.mxu0 %v1460
    %1524 = vmatpush1.bf16.msra.mxu0 %v1459
    %1525 = vmatprep.mubr.bf16.mxu0 %v1288
    %1526 = vmatmul.mubr.bf16.gmra.mrb[0].mxu0 %v1287
    %v1527 = vpop.f32.mrb[0].mxu0
    %v1528 = vadd.f32 %v1326, %v1527
    %v1529 = vpop.f32.mrb[0].mxu0
    %v1530 = vadd.f32 %v1330, %v1529
    %v1531 = vpop.f32.mrb[0].mxu0
    %v1532 = vpop.f32.mrb[0].mxu0
    %1533 = vdwg.mxu0
    %1534 = vst [vmem:[#allocation14] sm:$0xff] %v1528
    %1535 = vst [vmem:[#allocation14 + $0x8] sm:$0xff] %v1530
    // Predicated region
    $region82: #{tpu_custom_call.1} parent=1 // pred_check
      _
    $region83: #{tpu_custom_call.1} parent=1 // pred_check_branch
      %1537 = sbr.rel (0) target = $region85
    $region84: #{tpu_custom_call.1} parent=1 // pred_region
      %s1539 = ssub.s32 256, 256
      %1540 = vsyncadd [#allocation4], %s1539
      %s1542 = sshll.u32 [#allocation14], 4
      %s1543 = int_to_ptr.vmem [resolvable:$true] %s1542
      %1545 = dma.vmem_to_hbm [thread:$0]  %s1543, 256, %s13, [#allocation4]
    $region85: #{tpu_custom_call.1} parent=1 // pred_fallthru
      _
    // Predicated region
    $region86: #{tpu_custom_call.1} parent=1 // pred_check
      _
    $region87: #{tpu_custom_call.1} parent=1 // pred_check_branch
      %1547 = sbr.rel (0) target = $region89
    $region88: #{tpu_custom_call.1} parent=1 // pred_region
      %1548 = dma.done [#allocation4], 256
    $region89: #{tpu_custom_call.1} parent=1 // pred_fallthru
      _
    %1549 = vsyncpa [#allocation3], 1
    %1550 = vsyncpa [#allocation6], 1
    %1551 = vsyncpa [#allocation9], 1
    %1552 = vsyncpa [#allocation12], 1
    %1553 = vsyncpa [#allocation4], 1

// kernel: tpu_custom_call.1
$region0: #{tpu_custom_call.1}
  #allocation0 [shape = 'u32[]', space=smem, size = 0x4, offset = 0x4, fixed_abs, tag = 'smem constant byte address 0x4 - core index']
  #allocation1 [shape = 'u32[144,128]{1,0:T(1,128)}', space=vmem, size = 0x12000, scoped, tag = 'internal scratch']
  %s0 = inlined_call_operand.hbm [shape: bf16[8,128], index: 0, kind: input, shape index: {}]
  %s1 = inlined_call_operand.hbm [shape: bf16[128,256], index: 1, kind: input, shape index: {}]
  %s2 = inlined_call_operand.vmem [shape: f32[1,256], index: 2, kind: input, shape index: {}]
  %s3 = inlined_call_operand.hbm [shape: bf16[256,256], index: 3, kind: input, shape index: {}]
  %s4 = inlined_call_operand.vmem [shape: f32[1,256], index: 4, kind: input, shape index: {}]
  %s5 = inlined_call_operand.hbm [shape: bf16[256,256], index: 5, kind: input, shape index: {}]
  %s6 = inlined_call_operand.vmem [shape: f32[1,256], index: 6, kind: input, shape index: {}]
  %s7 = inlined_call_operand.hbm [shape: bf16[256,256], index: 7, kind: input, shape index: {}]
  %s8 = inlined_call_operand.vmem [shape: f32[1,256], index: 8, kind: input, shape index: {}]
  %s9 = inlined_call_operand.hbm [shape: bf16[256,256], index: 9, kind: input, shape index: {}]
  %s10 = inlined_call_operand.vmem [shape: f32[1,256], index: 10, kind: input, shape index: {}]
  %s11 = inlined_call_operand.hbm [shape: bf16[256,256], index: 11, kind: input, shape index: {}]
  %s12 = inlined_call_operand.vmem [shape: f32[1,256], index: 12, kind: input, shape index: {}]
  %s13 = inlined_call_operand.hbm [shape: f32[8,256], index: 13, kind: output, shape index: {}]
  %s14 = sld [smem:[#allocation0]]
  $region90: #{tpu_custom_call.1} parent=0
    _
  %s16 = ssub.s32 1, %s14
  %s17 = scalar_select 0, %s16, %s14
  $region1: #{tpu_custom_call.1} parent=0
    #allocation2 [shape = 'u8[2048]{0}', space=vmem, size = 0x800, scoped, tag = 'input window, operand 0, single buffered']
    #allocation3 [shape = 's32[1]{0}', space=sflag, size = 0x4, scoped, tag = 'scoped memory for tpu_custom_call.1']
    #allocation4 [shape = 's32[1]{0}', space=sflag, size = 0x4, scoped, tag = 'scoped memory for tpu_custom_call.1']
    #allocation5 [shape = 'u8[65536]{0}', space=vmem, size = 0x10000, scoped, tag = 'input window, operand 1, single buffered']
    #allocation6 [shape = 's32[1]{0}', space=sflag, size = 0x4, scoped, tag = 'scoped memory for tpu_custom_call.1']
    #allocation7 [shape = 'u8[131072]{0}', space=vmem, size = 0x20000, scoped, tag = 'input window, operand 3, single buffered']
    #allocation8 [shape = 'u8[131072]{0}', space=vmem, size = 0x20000, scoped, tag = 'input window, operand 5, single buffered']
    #allocation9 [shape = 's32[1]{0}', space=sflag, size = 0x4, scoped, tag = 'scoped memory for tpu_custom_call.1']
    #allocation10 [shape = 'u8[131072]{0}', space=vmem, size = 0x20000, scoped, tag = 'input window, operand 7, single buffered']
    #allocation11 [shape = 'u8[131072]{0}', space=vmem, size = 0x20000, scoped, tag = 'input window, operand 9, single buffered']
    #allocation12 [shape = 's32[1]{0}', space=sflag, size = 0x4, scoped, tag = 'scoped memory for tpu_custom_call.1']
    #allocation13 [shape = 'u8[131072]{0}', space=vmem, size = 0x20000, scoped, tag = 'input window, operand 11, single buffered']
    #allocation14 [shape = 'u8[8192]{0}', space=vmem, size = 0x2000, scoped, tag = 'output window, operand 0, single buffered']
    %18 = vsyncpa [#allocation3], 0
    %19 = vsyncpa [#allocation6], 0
    %20 = vsyncpa [#allocation9], 0
    %21 = vsyncpa [#allocation12], 0
    %22 = vsyncpa [#allocation4], 0
    // Predicated region
    $region2: #{tpu_custom_call.1} parent=1 // pred_check
      _
    $region3: #{tpu_custom_call.1} parent=1 // pred_check_branch
      %24 = sbr.rel (0) target = $region5
    $region4: #{tpu_custom_call.1} parent=1 // pred_region
      %s26 = ssub.s32 64, 64
      %27 = vsyncadd [#allocation3], %s26
      %s29 = sshll.u32 [#allocation2], 4
      %s30 = int_to_ptr.vmem [resolvable:$true] %s29
      %32 = dma.hbm_to_vmem [thread:$0]  %s0, 64, %s30, [#allocation3]
    $region5: #{tpu_custom_call.1} parent=1 // pred_fallthru
      _
    // Predicated region
    $region6: #{tpu_custom_call.1} parent=1 // pred_check
      _
    $region7: #{tpu_custom_call.1} parent=1 // pred_check_branch
      %34 = sbr.rel (0) target = $region9
    $region8: #{tpu_custom_call.1} parent=1 // pred_region
      %s36 = ssub.s32 2048, 2048
      %37 = vsyncadd [#allocation6], %s36
      %s38 = sshll.u32 [#allocation5], 4
      %s39 = int_to_ptr.vmem [resolvable:$true] %s38
      %44 = dma.hbm_to_vmem [thread:$0]  %s1, 2048, %s39, [#allocation6], 128, 128, 8
    $region9: #{tpu_custom_call.1} parent=1 // pred_fallthru
      _
    // Predicated region
    $region10: #{tpu_custom_call.1} parent=1 // pred_check
      _
    $region11: #{tpu_custom_call.1} parent=1 // pred_check_branch
      %46 = sbr.rel (0) target = $region13
    $region12: #{tpu_custom_call.1} parent=1 // pred_region
      _
    $region13: #{tpu_custom_call.1} parent=1 // pred_fallthru
      _
    // Predicated region
    $region14: #{tpu_custom_call.1} parent=1 // pred_check
      _
    $region15: #{tpu_custom_call.1} parent=1 // pred_check_branch
      %48 = sbr.rel (0) target = $region17
    $region16: #{tpu_custom_call.1} parent=1 // pred_region
      %s50 = ssub.s32 4096, 4096
      %51 = vsyncadd [#allocation6], %s50
      %s52 = sshll.u32 [#allocation7], 4
      %s53 = int_to_ptr.vmem [resolvable:$true] %s52
      %58 = dma.hbm_to_vmem [thread:$0]  %s3, 4096, %s53, [#allocation6], 128, 128, 8
    $region17: #{tpu_custom_call.1} parent=1 // pred_fallthru
      _
    // Predicated region
    $region18: #{tpu_custom_call.1} parent=1 // pred_check
      _
    $region19: #{tpu_custom_call.1} parent=1 // pred_check_branch
      %60 = sbr.rel (0) target = $region21
    $region20: #{tpu_custom_call.1} parent=1 // pred_region
      _
    $region21: #{tpu_custom_call.1} parent=1 // pred_fallthru
      _
    // Predicated region
    $region22: #{tpu_custom_call.1} parent=1 // pred_check
      _
    $region23: #{tpu_custom_call.1} parent=1 // pred_check_branch
      %62 = sbr.rel (0) target = $region25
    $region24: #{tpu_custom_call.1} parent=1 // pred_region
      %s64 = ssub.s32 4096, 4096
      %65 = vsyncadd [#allocation9], %s64
      %s66 = sshll.u32 [#allocation8], 4
      %s67 = int_to_ptr.vmem [resolvable:$true] %s66
      %72 = dma.hbm_to_vmem [thread:$0]  %s5, 4096, %s67, [#allocation9], 128, 128, 8
    $region25: #{tpu_custom_call.1} parent=1 // pred_fallthru
      _
    // Predicated region
    $region26: #{tpu_custom_call.1} parent=1 // pred_check
      _
    $region27: #{tpu_custom_call.1} parent=1 // pred_check_branch
      %74 = sbr.rel (0) target = $region29
    $region28: #{tpu_custom_call.1} parent=1 // pred_region
      _
    $region29: #{tpu_custom_call.1} parent=1 // pred_fallthru
      _
    // Predicated region
    $region30: #{tpu_custom_call.1} parent=1 // pred_check
      _
    $region31: #{tpu_custom_call.1} parent=1 // pred_check_branch
      %76 = sbr.rel (0) target = $region33
    $region32: #{tpu_custom_call.1} parent=1 // pred_region
      %s78 = ssub.s32 4096, 4096
      %79 = vsyncadd [#allocation9], %s78
      %s80 = sshll.u32 [#allocation10], 4
      %s81 = int_to_ptr.vmem [resolvable:$true] %s80
      %86 = dma.hbm_to_vmem [thread:$0]  %s7, 4096, %s81, [#allocation9], 128, 128, 8
    $region33: #{tpu_custom_call.1} parent=1 // pred_fallthru
      _
    // Predicated region
    $region34: #{tpu_custom_call.1} parent=1 // pred_check
      _
    $region35: #{tpu_custom_call.1} parent=1 // pred_check_branch
      %88 = sbr.rel (0) target = $region37
    $region36: #{tpu_custom_call.1} parent=1 // pred_region
      _
    $region37: #{tpu_custom_call.1} parent=1 // pred_fallthru
      _
    // Predicated region
    $region38: #{tpu_custom_call.1} parent=1 // pred_check
      _
    $region39: #{tpu_custom_call.1} parent=1 // pred_check_branch
      %90 = sbr.rel (0) target = $region41
    $region40: #{tpu_custom_call.1} parent=1 // pred_region
      %s92 = ssub.s32 4096, 4096
      %93 = vsyncadd [#allocation12], %s92
      %s94 = sshll.u32 [#allocation11], 4
      %s95 = int_to_ptr.vmem [resolvable:$true] %s94
      %100 = dma.hbm_to_vmem [thread:$0]  %s9, 4096, %s95, [#allocation12], 128, 128, 8
    $region41: #{tpu_custom_call.1} parent=1 // pred_fallthru
      _
    // Predicated region
    $region42: #{tpu_custom_call.1} parent=1 // pred_check
      _
    $region43: #{tpu_custom_call.1} parent=1 // pred_check_branch
      %102 = sbr.rel (0) target = $region45
    $region44: #{tpu_custom_call.1} parent=1 // pred_region
      _
    $region45: #{tpu_custom_call.1} parent=1 // pred_fallthru
      _
    // Predicated region
    $region46: #{tpu_custom_call.1} parent=1 // pred_check
      _
    $region47: #{tpu_custom_call.1} parent=1 // pred_check_branch
      %104 = sbr.rel (0) target = $region49
    $region48: #{tpu_custom_call.1} parent=1 // pred_region
      %s106 = ssub.s32 4096, 4096
      %107 = vsyncadd [#allocation12], %s106
      %s108 = sshll.u32 [#allocation13], 4
      %s109 = int_to_ptr.vmem [resolvable:$true] %s108
      %114 = dma.hbm_to_vmem [thread:$0]  %s11, 4096, %s109, [#allocation12], 128, 128, 8
    $region49: #{tpu_custom_call.1} parent=1 // pred_fallthru
      _
    // Predicated region
    $region50: #{tpu_custom_call.1} parent=1 // pred_check
      _
    $region51: #{tpu_custom_call.1} parent=1 // pred_check_branch
      %116 = sbr.rel (0) target = $region53
    $region52: #{tpu_custom_call.1} parent=1 // pred_region
      _
    $region53: #{tpu_custom_call.1} parent=1 // pred_fallthru
      _
    // Predicated region
    $region54: #{tpu_custom_call.1} parent=1 // pred_check
      _
    $region55: #{tpu_custom_call.1} parent=1 // pred_check_branch
      %118 = sbr.rel (0) target = $region57
    $region56: #{tpu_custom_call.1} parent=1 // pred_region
      %119 = dma.done [#allocation3], 64
    $region57: #{tpu_custom_call.1} parent=1 // pred_fallthru
      _
    // Predicated region
    $region58: #{tpu_custom_call.1} parent=1 // pred_check
      _
    $region59: #{tpu_custom_call.1} parent=1 // pred_check_branch
      %121 = sbr.rel (0) target = $region61
    $region60: #{tpu_custom_call.1} parent=1 // pred_region
      %122 = dma.done [#allocation6], 2048
    $region61: #{tpu_custom_call.1} parent=1 // pred_fallthru
      _
    // Predicated region
    $region62: #{tpu_custom_call.1} parent=1 // pred_check
      _
    $region63: #{tpu_custom_call.1} parent=1 // pred_check_branch
      %124 = sbr.rel (0) target = $region65
    $region64: #{tpu_custom_call.1} parent=1 // pred_region
      %125 = dma.done [#allocation6], 4096
    $region65: #{tpu_custom_call.1} parent=1 // pred_fallthru
      _
    // Predicated region
    $region66: #{tpu_custom_call.1} parent=1 // pred_check
      _
    $region67: #{tpu_custom_call.1} parent=1 // pred_check_branch
      %127 = sbr.rel (0) target = $region69
    $region68: #{tpu_custom_call.1} parent=1 // pred_region
      %128 = dma.done [#allocation9], 4096
    $region69: #{tpu_custom_call.1} parent=1 // pred_fallthru
      _
    // Predicated region
    $region70: #{tpu_custom_call.1} parent=1 // pred_check
      _
    $region71: #{tpu_custom_call.1} parent=1 // pred_check_branch
      %130 = sbr.rel (0) target = $region73
    $region72: #{tpu_custom_call.1} parent=1 // pred_region
      %131 = dma.done [#allocation9], 4096
    $region73: #{tpu_custom_call.1} parent=1 // pred_fallthru
      _
    // Predicated region
    $region74: #{tpu_custom_call.1} parent=1 // pred_check
      _
    $region75: #{tpu_custom_call.1} parent=1 // pred_check_branch
      %133 = sbr.rel (0) target = $region77
    $region76: #{tpu_custom_call.1} parent=1 // pred_region
      %134 = dma.done [#allocation12], 4096
    $region77: #{tpu_custom_call.1} parent=1 // pred_fallthru
      _
    // Predicated region
    $region78: #{tpu_custom_call.1} parent=1 // pred_check
      _
    $region79: #{tpu_custom_call.1} parent=1 // pred_check_branch
      %136 = sbr.rel (0) target = $region81
    $region80: #{tpu_custom_call.1} parent=1 // pred_region
      %137 = dma.done [#allocation12], 4096
    $region81: #{tpu_custom_call.1} parent=1 // pred_fallthru
      _
    %v139 = vld [vmem:[#allocation2] sm:$0xf]
    %v140 = vld [vmem:[#allocation5] sm:$0xff]
    %v141 = vld [vmem:[#allocation5 + $0x8] sm:$0xff]
    %v142 = vld [vmem:[#allocation5 + $0x10] sm:$0xff]
    %v143 = vld [vmem:[#allocation5 + $0x18] sm:$0xff]
    %v144 = vld [vmem:[#allocation5 + $0x20] sm:$0xff]
    %v145 = vld [vmem:[#allocation5 + $0x28] sm:$0xff]
    %v146 = vld [vmem:[#allocation5 + $0x30] sm:$0xff]
    %v147 = vld [vmem:[#allocation5 + $0x38] sm:$0xff]
    %v148 = vld [vmem:[#allocation5 + $0x40] sm:$0xff]
    %v149 = vld [vmem:[#allocation5 + $0x48] sm:$0xff]
    %v150 = vld [vmem:[#allocation5 + $0x50] sm:$0xff]
    %v151 = vld [vmem:[#allocation5 + $0x58] sm:$0xff]
    %v152 = vld [vmem:[#allocation5 + $0x60] sm:$0xff]
    %v153 = vld [vmem:[#allocation5 + $0x68] sm:$0xff]
    %v154 = vld [vmem:[#allocation5 + $0x70] sm:$0xff]
    %v155 = vld [vmem:[#allocation5 + $0x78] sm:$0xff]
    %v156 = vld [vmem:[%s2] sm:$0x3]
    %v158 = vlaneseq
    %v159 = vshrl.u32 %v158, 7
    %v160 = vsub.s32 0, %v159
    %v161 = vrot.slane %v156, %v160
    %v162 = vlaneseq
    %v163 = vshrl.u32 %v162, 7
    %v164 = vsub.s32 1, %v163
    %v165 = vrot.slane %v156, %v164
    %v184 = vunpack.c.l.b16 %v140
    %v185 = vunpack.c.h.b16 %v140
    %v186 = vunpack.c.l.b16 %v141
    %v187 = vunpack.c.h.b16 %v141
    %v188 = vunpack.c.l.b16 %v142
    %v189 = vunpack.c.h.b16 %v142
    %v190 = vunpack.c.l.b16 %v143
    %v191 = vunpack.c.h.b16 %v143
    %v192 = vunpack.c.l.b16 %v144
    %v193 = vunpack.c.h.b16 %v144
    %v194 = vunpack.c.l.b16 %v145
    %v195 = vunpack.c.h.b16 %v145
    %v196 = vunpack.c.l.b16 %v146
    %v197 = vunpack.c.h.b16 %v146
    %v198 = vunpack.c.l.b16 %v147
    %v199 = vunpack.c.h.b16 %v147
    %v200 = vunpack.c.l.b16 %v148
    %v201 = vunpack.c.h.b16 %v148
    %v202 = vunpack.c.l.b16 %v149
    %v203 = vunpack.c.h.b16 %v149
    %v204 = vunpack.c.l.b16 %v150
    %v205 = vunpack.c.h.b16 %v150
    %v206 = vunpack.c.l.b16 %v151
    %v207 = vunpack.c.h.b16 %v151
    %v208 = vunpack.c.l.b16 %v152
    %v209 = vunpack.c.h.b16 %v152
    %v210 = vunpack.c.l.b16 %v153
    %v211 = vunpack.c.h.b16 %v153
    %v212 = vunpack.c.l.b16 %v154
    %v213 = vunpack.c.h.b16 %v154
    %v214 = vunpack.c.l.b16 %v155
    %v215 = vunpack.c.h.b16 %v155
    %v216 = vpack.c.b16 %v186, %v184
    %v217 = vpack.c.b16 %v187, %v185
    %v218 = vpack.c.b16 %v190, %v188
    %v219 = vpack.c.b16 %v191, %v189
    %v220 = vpack.c.b16 %v194, %v192
    %v221 = vpack.c.b16 %v195, %v193
    %v222 = vpack.c.b16 %v198, %v196
    %v223 = vpack.c.b16 %v199, %v197
    %v224 = vpack.c.b16 %v202, %v200
    %v225 = vpack.c.b16 %v203, %v201
    %v226 = vpack.c.b16 %v206, %v204
    %v227 = vpack.c.b16 %v207, %v205
    %v228 = vpack.c.b16 %v210, %v208
    %v229 = vpack.c.b16 %v211, %v209
    %v230 = vpack.c.b16 %v214, %v212
    %v231 = vpack.c.b16 %v215, %v213
    %248 = vmatprep.subr.bf16.mxu0 %v217
    %249 = vmatpush1.bf16.msra.mxu0 %v216
    %250 = vmatprep.subr.bf16.mxu0 %v219
    %251 = vmatpush1.bf16.msra.mxu0 %v218
    %252 = vmatprep.subr.bf16.mxu0 %v221
    %253 = vmatpush1.bf16.msra.mxu0 %v220
    %254 = vmatprep.subr.bf16.mxu0 %v223
    %255 = vmatpush1.bf16.msra.mxu0 %v222
    %256 = vmatprep.subr.bf16.mxu0 %v225
    %257 = vmatpush1.bf16.msra.mxu0 %v224
    %258 = vmatprep.subr.bf16.mxu0 %v227
    %259 = vmatpush1.bf16.msra.mxu0 %v226
    %260 = vmatprep.subr.bf16.mxu0 %v229
    %261 = vmatpush1.bf16.msra.mxu0 %v228
    %262 = vmatprep.subr.bf16.mxu0 %v231
    %263 = vmatpush1.bf16.msra.mxu0 %v230
    %264 = vmatprep.subr.bf16.mxu0 0
    %265 = vmatpush1.bf16.msra.mxu0 0
    %266 = vmatprep.subr.bf16.mxu0 0
    %267 = vmatpush1.bf16.msra.mxu0 0
    %268 = vmatprep.subr.bf16.mxu0 0
    %269 = vmatpush1.bf16.msra.mxu0 0
    %270 = vmatprep.subr.bf16.mxu0 0
    %271 = vmatpush1.bf16.msra.mxu0 0
    %272 = vmatprep.subr.bf16.mxu0 0
    %273 = vmatpush1.bf16.msra.mxu0 0
    %274 = vmatprep.subr.bf16.mxu0 0
    %275 = vmatpush1.bf16.msra.mxu0 0
    %276 = vmatprep.subr.bf16.mxu0 0
    %277 = vmatpush1.bf16.msra.mxu0 0
    %278 = vmatprep.subr.bf16.mxu0 0
    %279 = vmatpush1.bf16.msra.mxu0 0
    %280 = vmatprep.mubr.bf16.mxu0 0
    %281 = vmatmul.mubr.bf16.gmra.mrb[0].mxu0 %v139
    %v282 = vpop.f32.mrb[0].mxu0
    %v283 = vadd.f32 %v161, %v282
    %v284 = vpop.f32.mrb[0].mxu0
    %v285 = vadd.f32 %v165, %v284
    %v286 = vpop.f32.mrb[0].mxu0
    %v287 = vpop.f32.mrb[0].mxu0
    %288 = vdwg.mxu0
    %v289 = vmax.f32 %v283, 0.0
    %v290 = vmax.f32 %v285, 0.0
    %v291 = vpack.c.bf16 %v289, %v289
    %v292 = vpack.c.bf16 %v290, %v290
    %v293 = vld [vmem:[#allocation7] sm:$0xff]
    %v294 = vld [vmem:[#allocation7 + $0x8] sm:$0xff]
    %v295 = vld [vmem:[#allocation7 + $0x10] sm:$0xff]
    %v296 = vld [vmem:[#allocation7 + $0x18] sm:$0xff]
    %v297 = vld [vmem:[#allocation7 + $0x20] sm:$0xff]
    %v298 = vld [vmem:[#allocation7 + $0x28] sm:$0xff]
    %v299 = vld [vmem:[#allocation7 + $0x30] sm:$0xff]
    %v300 = vld [vmem:[#allocation7 + $0x38] sm:$0xff]
    %v301 = vld [vmem:[#allocation7 + $0x40] sm:$0xff]
    %v302 = vld [vmem:[#allocation7 + $0x48] sm:$0xff]
    %v303 = vld [vmem:[#allocation7 + $0x50] sm:$0xff]
    %v304 = vld [vmem:[#allocation7 + $0x58] sm:$0xff]
    %v305 = vld [vmem:[#allocation7 + $0x60] sm:$0xff]
    %v306 = vld [vmem:[#allocation7 + $0x68] sm:$0xff]
    %v307 = vld [vmem:[#allocation7 + $0x70] sm:$0xff]
    %v308 = vld [vmem:[#allocation7 + $0x78] sm:$0xff]
    %v309 = vld [vmem:[#allocation7 + $0x80] sm:$0xff]
    %v310 = vld [vmem:[#allocation7 + $0x88] sm:$0xff]
    %v311 = vld [vmem:[#allocation7 + $0x90] sm:$0xff]
    %v312 = vld [vmem:[#allocation7 + $0x98] sm:$0xff]
    %v313 = vld [vmem:[#allocation7 + $0xa0] sm:$0xff]
    %v314 = vld [vmem:[#allocation7 + $0xa8] sm:$0xff]
    %v315 = vld [vmem:[#allocation7 + $0xb0] sm:$0xff]
    %v316 = vld [vmem:[#allocation7 + $0xb8] sm:$0xff]
    %v317 = vld [vmem:[#allocation7 + $0xc0] sm:$0xff]
    %v318 = vld [vmem:[#allocation7 + $0xc8] sm:$0xff]
    %v319 = vld [vmem:[#allocation7 + $0xd0] sm:$0xff]
    %v320 = vld [vmem:[#allocation7 + $0xd8] sm:$0xff]
    %v321 = vld [vmem:[#allocation7 + $0xe0] sm:$0xff]
    %v322 = vld [vmem:[#allocation7 + $0xe8] sm:$0xff]
    %v323 = vld [vmem:[#allocation7 + $0xf0] sm:$0xff]
    %v324 = vld [vmem:[#allocation7 + $0xf8] sm:$0xff]
    %v325 = vld [vmem:[%s4] sm:$0x3]
    %v327 = vlaneseq
    %v328 = vshrl.u32 %v327, 7
    %v329 = vsub.s32 0, %v328
    %v330 = vrot.slane %v325, %v329
    %v331 = vlaneseq
    %v332 = vshrl.u32 %v331, 7
    %v333 = vsub.s32 1, %v332
    %v334 = vrot.slane %v325, %v333
    %v369 = vunpack.c.l.b16 %v293
    %v370 = vunpack.c.h.b16 %v293
    %v371 = vunpack.c.l.b16 %v294
    %v372 = vunpack.c.h.b16 %v294
    %v373 = vunpack.c.l.b16 %v295
    %v374 = vunpack.c.h.b16 %v295
    %v375 = vunpack.c.l.b16 %v296
    %v376 = vunpack.c.h.b16 %v296
    %v377 = vunpack.c.l.b16 %v297
    %v378 = vunpack.c.h.b16 %v297
    %v379 = vunpack.c.l.b16 %v298
    %v380 = vunpack.c.h.b16 %v298
    %v381 = vunpack.c.l.b16 %v299
    %v382 = vunpack.c.h.b16 %v299
    %v383 = vunpack.c.l.b16 %v300
    %v384 = vunpack.c.h.b16 %v300
    %v385 = vunpack.c.l.b16 %v301
    %v386 = vunpack.c.h.b16 %v301
    %v387 = vunpack.c.l.b16 %v302
    %v388 = vunpack.c.h.b16 %v302
    %v389 = vunpack.c.l.b16 %v303
    %v390 = vunpack.c.h.b16 %v303
    %v391 = vunpack.c.l.b16 %v304
    %v392 = vunpack.c.h.b16 %v304
    %v393 = vunpack.c.l.b16 %v305
    %v394 = vunpack.c.h.b16 %v305
    %v395 = vunpack.c.l.b16 %v306
    %v396 = vunpack.c.h.b16 %v306
    %v397 = vunpack.c.l.b16 %v307
    %v398 = vunpack.c.h.b16 %v307
    %v399 = vunpack.c.l.b16 %v308
    %v400 = vunpack.c.h.b16 %v308
    %v401 = vunpack.c.l.b16 %v309
    %v402 = vunpack.c.h.b16 %v309
    %v403 = vunpack.c.l.b16 %v310
    %v404 = vunpack.c.h.b16 %v310
    %v405 = vunpack.c.l.b16 %v311
    %v406 = vunpack.c.h.b16 %v311
    %v407 = vunpack.c.l.b16 %v312
    %v408 = vunpack.c.h.b16 %v312
    %v409 = vunpack.c.l.b16 %v313
    %v410 = vunpack.c.h.b16 %v313
    %v411 = vunpack.c.l.b16 %v314
    %v412 = vunpack.c.h.b16 %v314
    %v413 = vunpack.c.l.b16 %v315
    %v414 = vunpack.c.h.b16 %v315
    %v415 = vunpack.c.l.b16 %v316
    %v416 = vunpack.c.h.b16 %v316
    %v417 = vunpack.c.l.b16 %v317
    %v418 = vunpack.c.h.b16 %v317
    %v419 = vunpack.c.l.b16 %v318
    %v420 = vunpack.c.h.b16 %v318
    %v421 = vunpack.c.l.b16 %v319
    %v422 = vunpack.c.h.b16 %v319
    %v423 = vunpack.c.l.b16 %v320
    %v424 = vunpack.c.h.b16 %v320
    %v425 = vunpack.c.l.b16 %v321
    %v426 = vunpack.c.h.b16 %v321
    %v427 = vunpack.c.l.b16 %v322
    %v428 = vunpack.c.h.b16 %v322
    %v429 = vunpack.c.l.b16 %v323
    %v430 = vunpack.c.h.b16 %v323
    %v431 = vunpack.c.l.b16 %v324
    %v432 = vunpack.c.h.b16 %v324
    %v433 = vpack.c.b16 %v371, %v369
    %v434 = vpack.c.b16 %v372, %v370
    %v435 = vpack.c.b16 %v375, %v373
    %v436 = vpack.c.b16 %v376, %v374
    %v437 = vpack.c.b16 %v379, %v377
    %v438 = vpack.c.b16 %v380, %v378
    %v439 = vpack.c.b16 %v383, %v381
    %v440 = vpack.c.b16 %v384, %v382
    %v441 = vpack.c.b16 %v387, %v385
    %v442 = vpack.c.b16 %v388, %v386
    %v443 = vpack.c.b16 %v391, %v389
    %v444 = vpack.c.b16 %v392, %v390
    %v445 = vpack.c.b16 %v395, %v393
    %v446 = vpack.c.b16 %v396, %v394
    %v447 = vpack.c.b16 %v399, %v397
    %v448 = vpack.c.b16 %v400, %v398
    %v449 = vpack.c.b16 %v403, %v401
    %v450 = vpack.c.b16 %v404, %v402
    %v451 = vpack.c.b16 %v407, %v405
    %v452 = vpack.c.b16 %v408, %v406
    %v453 = vpack.c.b16 %v411, %v409
    %v454 = vpack.c.b16 %v412, %v410
    %v455 = vpack.c.b16 %v415, %v413
    %v456 = vpack.c.b16 %v416, %v414
    %v457 = vpack.c.b16 %v419, %v417
    %v458 = vpack.c.b16 %v420, %v418
    %v459 = vpack.c.b16 %v423, %v421
    %v460 = vpack.c.b16 %v424, %v422
    %v461 = vpack.c.b16 %v427, %v425
    %v462 = vpack.c.b16 %v428, %v426
    %v463 = vpack.c.b16 %v431, %v429
    %v464 = vpack.c.b16 %v432, %v430
    %497 = vmatprep.subr.bf16.mxu0 %v434
    %498 = vmatpush1.bf16.msra.mxu0 %v433
    %499 = vmatprep.subr.bf16.mxu0 %v436
    %500 = vmatpush1.bf16.msra.mxu0 %v435
    %501 = vmatprep.subr.bf16.mxu0 %v438
    %502 = vmatpush1.bf16.msra.mxu0 %v437
    %503 = vmatprep.subr.bf16.mxu0 %v440
    %504 = vmatpush1.bf16.msra.mxu0 %v439
    %505 = vmatprep.subr.bf16.mxu0 %v442
    %506 = vmatpush1.bf16.msra.mxu0 %v441
    %507 = vmatprep.subr.bf16.mxu0 %v444
    %508 = vmatpush1.bf16.msra.mxu0 %v443
    %509 = vmatprep.subr.bf16.mxu0 %v446
    %510 = vmatpush1.bf16.msra.mxu0 %v445
    %511 = vmatprep.subr.bf16.mxu0 %v448
    %512 = vmatpush1.bf16.msra.mxu0 %v447
    %513 = vmatprep.subr.bf16.mxu0 %v450
    %514 = vmatpush1.bf16.msra.mxu0 %v449
    %515 = vmatprep.subr.bf16.mxu0 %v452
    %516 = vmatpush1.bf16.msra.mxu0 %v451
    %517 = vmatprep.subr.bf16.mxu0 %v454
    %518 = vmatpush1.bf16.msra.mxu0 %v453
    %519 = vmatprep.subr.bf16.mxu0 %v456
    %520 = vmatpush1.bf16.msra.mxu0 %v455
    %521 = vmatprep.subr.bf16.mxu0 %v458
    %522 = vmatpush1.bf16.msra.mxu0 %v457
    %523 = vmatprep.subr.bf16.mxu0 %v460
    %524 = vmatpush1.bf16.msra.mxu0 %v459
    %525 = vmatprep.subr.bf16.mxu0 %v462
    %526 = vmatpush1.bf16.msra.mxu0 %v461
    %527 = vmatprep.subr.bf16.mxu0 %v464
    %528 = vmatpush1.bf16.msra.mxu0 %v463
    %529 = vmatprep.mubr.bf16.mxu0 %v292
    %530 = vmatmul.mubr.bf16.gmra.mrb[0].mxu0 %v291
    %v531 = vpop.f32.mrb[0].mxu0
    %v532 = vadd.f32 %v330, %v531
    %v533 = vpop.f32.mrb[0].mxu0
    %v534 = vadd.f32 %v334, %v533
    %v535 = vpop.f32.mrb[0].mxu0
    %v536 = vpop.f32.mrb[0].mxu0
    %537 = vdwg.mxu0
    %v538 = vmax.f32 %v532, 0.0
    %v539 = vmax.f32 %v534, 0.0
    %v540 = vpack.c.bf16 %v538, %v538
    %v541 = vpack.c.bf16 %v539, %v539
    %v542 = vld [vmem:[#allocation8] sm:$0xff]
    %v543 = vld [vmem:[#allocation8 + $0x8] sm:$0xff]
    %v544 = vld [vmem:[#allocation8 + $0x10] sm:$0xff]
    %v545 = vld [vmem:[#allocation8 + $0x18] sm:$0xff]
    %v546 = vld [vmem:[#allocation8 + $0x20] sm:$0xff]
    %v547 = vld [vmem:[#allocation8 + $0x28] sm:$0xff]
    %v548 = vld [vmem:[#allocation8 + $0x30] sm:$0xff]
    %v549 = vld [vmem:[#allocation8 + $0x38] sm:$0xff]
    %v550 = vld [vmem:[#allocation8 + $0x40] sm:$0xff]
    %v551 = vld [vmem:[#allocation8 + $0x48] sm:$0xff]
    %v552 = vld [vmem:[#allocation8 + $0x50] sm:$0xff]
    %v553 = vld [vmem:[#allocation8 + $0x58] sm:$0xff]
    %v554 = vld [vmem:[#allocation8 + $0x60] sm:$0xff]
    %v555 = vld [vmem:[#allocation8 + $0x68] sm:$0xff]
    %v556 = vld [vmem:[#allocation8 + $0x70] sm:$0xff]
    %v557 = vld [vmem:[#allocation8 + $0x78] sm:$0xff]
    %v558 = vld [vmem:[#allocation8 + $0x80] sm:$0xff]
    %v559 = vld [vmem:[#allocation8 + $0x88] sm:$0xff]
    %v560 = vld [vmem:[#allocation8 + $0x90] sm:$0xff]
    %v561 = vld [vmem:[#allocation8 + $0x98] sm:$0xff]
    %v562 = vld [vmem:[#allocation8 + $0xa0] sm:$0xff]
    %v563 = vld [vmem:[#allocation8 + $0xa8] sm:$0xff]
    %v564 = vld [vmem:[#allocation8 + $0xb0] sm:$0xff]
    %v565 = vld [vmem:[#allocation8 + $0xb8] sm:$0xff]
    %v566 = vld [vmem:[#allocation8 + $0xc0] sm:$0xff]
    %v567 = vld [vmem:[#allocation8 + $0xc8] sm:$0xff]
    %v568 = vld [vmem:[#allocation8 + $0xd0] sm:$0xff]
    %v569 = vld [vmem:[#allocation8 + $0xd8] sm:$0xff]
    %v570 = vld [vmem:[#allocation8 + $0xe0] sm:$0xff]
    %v571 = vld [vmem:[#allocation8 + $0xe8] sm:$0xff]
    %v572 = vld [vmem:[#allocation8 + $0xf0] sm:$0xff]
    %v573 = vld [vmem:[#allocation8 + $0xf8] sm:$0xff]
    %v574 = vld [vmem:[%s6] sm:$0x3]
    %v576 = vlaneseq
    %v577 = vshrl.u32 %v576, 7
    %v578 = vsub.s32 0, %v577
    %v579 = vrot.slane %v574, %v578
    %v580 = vlaneseq
    %v581 = vshrl.u32 %v580, 7
    %v582 = vsub.s32 1, %v581
    %v583 = vrot.slane %v574, %v582
    %v618 = vunpack.c.l.b16 %v542
    %v619 = vunpack.c.h.b16 %v542
    %v620 = vunpack.c.l.b16 %v543
    %v621 = vunpack.c.h.b16 %v543
    %v622 = vunpack.c.l.b16 %v544
    %v623 = vunpack.c.h.b16 %v544
    %v624 = vunpack.c.l.b16 %v545
    %v625 = vunpack.c.h.b16 %v545
    %v626 = vunpack.c.l.b16 %v546
    %v627 = vunpack.c.h.b16 %v546
    %v628 = vunpack.c.l.b16 %v547
    %v629 = vunpack.c.h.b16 %v547
    %v630 = vunpack.c.l.b16 %v548
    %v631 = vunpack.c.h.b16 %v548
    %v632 = vunpack.c.l.b16 %v549
    %v633 = vunpack.c.h.b16 %v549
    %v634 = vunpack.c.l.b16 %v550
    %v635 = vunpack.c.h.b16 %v550
    %v636 = vunpack.c.l.b16 %v551
    %v637 = vunpack.c.h.b16 %v551
    %v638 = vunpack.c.l.b16 %v552
    %v639 = vunpack.c.h.b16 %v552
    %v640 = vunpack.c.l.b16 %v553
    %v641 = vunpack.c.h.b16 %v553
    %v642 = vunpack.c.l.b16 %v554
    %v643 = vunpack.c.h.b16 %v554
    %v644 = vunpack.c.l.b16 %v555
    %v645 = vunpack.c.h.b16 %v555
    %v646 = vunpack.c.l.b16 %v556
    %v647 = vunpack.c.h.b16 %v556
    %v648 = vunpack.c.l.b16 %v557
    %v649 = vunpack.c.h.b16 %v557
    %v650 = vunpack.c.l.b16 %v558
    %v651 = vunpack.c.h.b16 %v558
    %v652 = vunpack.c.l.b16 %v559
    %v653 = vunpack.c.h.b16 %v559
    %v654 = vunpack.c.l.b16 %v560
    %v655 = vunpack.c.h.b16 %v560
    %v656 = vunpack.c.l.b16 %v561
    %v657 = vunpack.c.h.b16 %v561
    %v658 = vunpack.c.l.b16 %v562
    %v659 = vunpack.c.h.b16 %v562
    %v660 = vunpack.c.l.b16 %v563
    %v661 = vunpack.c.h.b16 %v563
    %v662 = vunpack.c.l.b16 %v564
    %v663 = vunpack.c.h.b16 %v564
    %v664 = vunpack.c.l.b16 %v565
    %v665 = vunpack.c.h.b16 %v565
    %v666 = vunpack.c.l.b16 %v566
    %v667 = vunpack.c.h.b16 %v566
    %v668 = vunpack.c.l.b16 %v567
    %v669 = vunpack.c.h.b16 %v567
    %v670 = vunpack.c.l.b16 %v568
    %v671 = vunpack.c.h.b16 %v568
    %v672 = vunpack.c.l.b16 %v569
    %v673 = vunpack.c.h.b16 %v569
    %v674 = vunpack.c.l.b16 %v570
    %v675 = vunpack.c.h.b16 %v570
    %v676 = vunpack.c.l.b16 %v571
    %v677 = vunpack.c.h.b16 %v571
    %v678 = vunpack.c.l.b16 %v572
    %v679 = vunpack.c.h.b16 %v572
    %v680 = vunpack.c.l.b16 %v573
    %v681 = vunpack.c.h.b16 %v573
    %v682 = vpack.c.b16 %v620, %v618
    %v683 = vpack.c.b16 %v621, %v619
    %v684 = vpack.c.b16 %v624, %v622
    %v685 = vpack.c.b16 %v625, %v623
    %v686 = vpack.c.b16 %v628, %v626
    %v687 = vpack.c.b16 %v629, %v627
    %v688 = vpack.c.b16 %v632, %v630
    %v689 = vpack.c.b16 %v633, %v631
    %v690 = vpack.c.b16 %v636, %v634
    %v691 = vpack.c.b16 %v637, %v635
    %v692 = vpack.c.b16 %v640, %v638
    %v693 = vpack.c.b16 %v641, %v639
    %v694 = vpack.c.b16 %v644, %v642
    %v695 = vpack.c.b16 %v645, %v643
    %v696 = vpack.c.b16 %v648, %v646
    %v697 = vpack.c.b16 %v649, %v647
    %v698 = vpack.c.b16 %v652, %v650
    %v699 = vpack.c.b16 %v653, %v651
    %v700 = vpack.c.b16 %v656, %v654
    %v701 = vpack.c.b16 %v657, %v655
    %v702 = vpack.c.b16 %v660, %v658
    %v703 = vpack.c.b16 %v661, %v659
    %v704 = vpack.c.b16 %v664, %v662
    %v705 = vpack.c.b16 %v665, %v663
    %v706 = vpack.c.b16 %v668, %v666
    %v707 = vpack.c.b16 %v669, %v667
    %v708 = vpack.c.b16 %v672, %v670
    %v709 = vpack.c.b16 %v673, %v671
    %v710 = vpack.c.b16 %v676, %v674
    %v711 = vpack.c.b16 %v677, %v675
    %v712 = vpack.c.b16 %v680, %v678
    %v713 = vpack.c.b16 %v681, %v679
    %746 = vmatprep.subr.bf16.mxu0 %v683
    %747 = vmatpush1.bf16.msra.mxu0 %v682
    %748 = vmatprep.subr.bf16.mxu0 %v685
    %749 = vmatpush1.bf16.msra.mxu0 %v684
    %750 = vmatprep.subr.bf16.mxu0 %v687
    %751 = vmatpush1.bf16.msra.mxu0 %v686
    %752 = vmatprep.subr.bf16.mxu0 %v689
    %753 = vmatpush1.bf16.msra.mxu0 %v688
    %754 = vmatprep.subr.bf16.mxu0 %v691
    %755 = vmatpush1.bf16.msra.mxu0 %v690
    %756 = vmatprep.subr.bf16.mxu0 %v693
    %757 = vmatpush1.bf16.msra.mxu0 %v692
    %758 = vmatprep.subr.bf16.mxu0 %v695
    %759 = vmatpush1.bf16.msra.mxu0 %v694
    %760 = vmatprep.subr.bf16.mxu0 %v697
    %761 = vmatpush1.bf16.msra.mxu0 %v696
    %762 = vmatprep.subr.bf16.mxu0 %v699
    %763 = vmatpush1.bf16.msra.mxu0 %v698
    %764 = vmatprep.subr.bf16.mxu0 %v701
    %765 = vmatpush1.bf16.msra.mxu0 %v700
    %766 = vmatprep.subr.bf16.mxu0 %v703
    %767 = vmatpush1.bf16.msra.mxu0 %v702
    %768 = vmatprep.subr.bf16.mxu0 %v705
    %769 = vmatpush1.bf16.msra.mxu0 %v704
    %770 = vmatprep.subr.bf16.mxu0 %v707
    %771 = vmatpush1.bf16.msra.mxu0 %v706
    %772 = vmatprep.subr.bf16.mxu0 %v709
    %773 = vmatpush1.bf16.msra.mxu0 %v708
    %774 = vmatprep.subr.bf16.mxu0 %v711
    %775 = vmatpush1.bf16.msra.mxu0 %v710
    %776 = vmatprep.subr.bf16.mxu0 %v713
    %777 = vmatpush1.bf16.msra.mxu0 %v712
    %778 = vmatprep.mubr.bf16.mxu0 %v541
    %779 = vmatmul.mubr.bf16.gmra.mrb[0].mxu0 %v540
    %v780 = vpop.f32.mrb[0].mxu0
    %v781 = vadd.f32 %v579, %v780
    %v782 = vpop.f32.mrb[0].mxu0
    %v783 = vadd.f32 %v583, %v782
    %v784 = vpop.f32.mrb[0].mxu0
    %v785 = vpop.f32.mrb[0].mxu0
    %786 = vdwg.mxu0
    %v787 = vmax.f32 %v781, 0.0
    %v788 = vmax.f32 %v783, 0.0
    %v789 = vpack.c.bf16 %v787, %v787
    %v790 = vpack.c.bf16 %v788, %v788
    %v791 = vld [vmem:[#allocation10] sm:$0xff]
    %v792 = vld [vmem:[#allocation10 + $0x8] sm:$0xff]
    %v793 = vld [vmem:[#allocation10 + $0x10] sm:$0xff]
    %v794 = vld [vmem:[#allocation10 + $0x18] sm:$0xff]
    %v795 = vld [vmem:[#allocation10 + $0x20] sm:$0xff]
    %v796 = vld [vmem:[#allocation10 + $0x28] sm:$0xff]
    %v797 = vld [vmem:[#allocation10 + $0x30] sm:$0xff]
    %v798 = vld [vmem:[#allocation10 + $0x38] sm:$0xff]
    %v799 = vld [vmem:[#allocation10 + $0x40] sm:$0xff]
    %v800 = vld [vmem:[#allocation10 + $0x48] sm:$0xff]
    %v801 = vld [vmem:[#allocation10 + $0x50] sm:$0xff]
    %v802 = vld [vmem:[#allocation10 + $0x58] sm:$0xff]
    %v803 = vld [vmem:[#allocation10 + $0x60] sm:$0xff]
    %v804 = vld [vmem:[#allocation10 + $0x68] sm:$0xff]
    %v805 = vld [vmem:[#allocation10 + $0x70] sm:$0xff]
    %v806 = vld [vmem:[#allocation10 + $0x78] sm:$0xff]
    %v807 = vld [vmem:[#allocation10 + $0x80] sm:$0xff]
    %v808 = vld [vmem:[#allocation10 + $0x88] sm:$0xff]
    %v809 = vld [vmem:[#allocation10 + $0x90] sm:$0xff]
    %v810 = vld [vmem:[#allocation10 + $0x98] sm:$0xff]
    %v811 = vld [vmem:[#allocation10 + $0xa0] sm:$0xff]
    %v812 = vld [vmem:[#allocation10 + $0xa8] sm:$0xff]
    %v813 = vld [vmem:[#allocation10 + $0xb0] sm:$0xff]
    %v814 = vld [vmem:[#allocation10 + $0xb8] sm:$0xff]
    %v815 = vld [vmem:[#allocation10 + $0xc0] sm:$0xff]
    %v816 = vld [vmem:[#allocation10 + $0xc8] sm:$0xff]
    %v817 = vld [vmem:[#allocation10 + $0xd0] sm:$0xff]
    %v818 = vld [vmem:[#allocation10 + $0xd8] sm:$0xff]
    %v819 = vld [vmem:[#allocation10 + $0xe0] sm:$0xff]
    %v820 = vld [vmem:[#allocation10 + $0xe8] sm:$0xff]
    %v821 = vld [vmem:[#allocation10 + $0xf0] sm:$0xff]
    %v822 = vld [vmem:[#allocation10 + $0xf8] sm:$0xff]
    %v823 = vld [vmem:[%s8] sm:$0x3]
    %v825 = vlaneseq
    %v826 = vshrl.u32 %v825, 7
    %v827 = vsub.s32 0, %v826
    %v828 = vrot.slane %v823, %v827
    %v829 = vlaneseq
    %v830 = vshrl.u32 %v829, 7
    %v831 = vsub.s32 1, %v830
    %v832 = vrot.slane %v823, %v831
    %v867 = vunpack.c.l.b16 %v791
    %v868 = vunpack.c.h.b16 %v791
    %v869 = vunpack.c.l.b16 %v792
    %v870 = vunpack.c.h.b16 %v792
    %v871 = vunpack.c.l.b16 %v793
    %v872 = vunpack.c.h.b16 %v793
    %v873 = vunpack.c.l.b16 %v794
    %v874 = vunpack.c.h.b16 %v794
    %v875 = vunpack.c.l.b16 %v795
    %v876 = vunpack.c.h.b16 %v795
    %v877 = vunpack.c.l.b16 %v796
    %v878 = vunpack.c.h.b16 %v796
    %v879 = vunpack.c.l.b16 %v797
    %v880 = vunpack.c.h.b16 %v797
    %v881 = vunpack.c.l.b16 %v798
    %v882 = vunpack.c.h.b16 %v798
    %v883 = vunpack.c.l.b16 %v799
    %v884 = vunpack.c.h.b16 %v799
    %v885 = vunpack.c.l.b16 %v800
    %v886 = vunpack.c.h.b16 %v800
    %v887 = vunpack.c.l.b16 %v801
    %v888 = vunpack.c.h.b16 %v801
    %v889 = vunpack.c.l.b16 %v802
    %v890 = vunpack.c.h.b16 %v802
    %v891 = vunpack.c.l.b16 %v803
    %v892 = vunpack.c.h.b16 %v803
    %v893 = vunpack.c.l.b16 %v804
    %v894 = vunpack.c.h.b16 %v804
    %v895 = vunpack.c.l.b16 %v805
    %v896 = vunpack.c.h.b16 %v805
    %v897 = vunpack.c.l.b16 %v806
    %v898 = vunpack.c.h.b16 %v806
    %v899 = vunpack.c.l.b16 %v807
    %v900 = vunpack.c.h.b16 %v807
    %v901 = vunpack.c.l.b16 %v808
    %v902 = vunpack.c.h.b16 %v808
    %v903 = vunpack.c.l.b16 %v809
    %v904 = vunpack.c.h.b16 %v809
    %v905 = vunpack.c.l.b16 %v810
    %v906 = vunpack.c.h.b16 %v810
    %v907 = vunpack.c.l.b16 %v811
    %v908 = vunpack.c.h.b16 %v811
    %v909 = vunpack.c.l.b16 %v812
    %v910 = vunpack.c.h.b16 %v812
    %v911 = vunpack.c.l.b16 %v813
    %v912 = vunpack.c.h.b16 %v813
    %v913 = vunpack.c.l.b16 %v814
    %v914 = vunpack.c.h.b16 %v814
    %v915 = vunpack.c.l.b16 %v815
    %v916 = vunpack.c.h.b16 %v815
    %v917 = vunpack.c.l.b16 %v816
    %v918 = vunpack.c.h.b16 %v816
    %v919 = vunpack.c.l.b16 %v817
    %v920 = vunpack.c.h.b16 %v817
    %v921 = vunpack.c.l.b16 %v818
    %v922 = vunpack.c.h.b16 %v818
    %v923 = vunpack.c.l.b16 %v819
    %v924 = vunpack.c.h.b16 %v819
    %v925 = vunpack.c.l.b16 %v820
    %v926 = vunpack.c.h.b16 %v820
    %v927 = vunpack.c.l.b16 %v821
    %v928 = vunpack.c.h.b16 %v821
    %v929 = vunpack.c.l.b16 %v822
    %v930 = vunpack.c.h.b16 %v822
    %v931 = vpack.c.b16 %v869, %v867
    %v932 = vpack.c.b16 %v870, %v868
    %v933 = vpack.c.b16 %v873, %v871
    %v934 = vpack.c.b16 %v874, %v872
    %v935 = vpack.c.b16 %v877, %v875
    %v936 = vpack.c.b16 %v878, %v876
    %v937 = vpack.c.b16 %v881, %v879
    %v938 = vpack.c.b16 %v882, %v880
    %v939 = vpack.c.b16 %v885, %v883
    %v940 = vpack.c.b16 %v886, %v884
    %v941 = vpack.c.b16 %v889, %v887
    %v942 = vpack.c.b16 %v890, %v888
    %v943 = vpack.c.b16 %v893, %v891
    %v944 = vpack.c.b16 %v894, %v892
    %v945 = vpack.c.b16 %v897, %v895
    %v946 = vpack.c.b16 %v898, %v896
    %v947 = vpack.c.b16 %v901, %v899
    %v948 = vpack.c.b16 %v902, %v900
    %v949 = vpack.c.b16 %v905, %v903
    %v950 = vpack.c.b16 %v906, %v904
    %v951 = vpack.c.b16 %v909, %v907
    %v952 = vpack.c.b16 %v910, %v908
    %v953 = vpack.c.b16 %v913, %v911
    %v954 = vpack.c.b16 %v914, %v912
    %v955 = vpack.c.b16 %v917, %v915
    %v956 = vpack.c.b16 %v918, %v916
    %v957 = vpack.c.b16 %v921, %v919
    %v958 = vpack.c.b16 %v922, %v920
    %v959 = vpack.c.b16 %v925, %v923
    %v960 = vpack.c.b16 %v926, %v924
    %v961 = vpack.c.b16 %v929, %v927
    %v962 = vpack.c.b16 %v930, %v928
    %995 = vmatprep.subr.bf16.mxu0 %v932
    %996 = vmatpush1.bf16.msra.mxu0 %v931
    %997 = vmatprep.subr.bf16.mxu0 %v934
    %998 = vmatpush1.bf16.msra.mxu0 %v933
    %999 = vmatprep.subr.bf16.mxu0 %v936
    %1000 = vmatpush1.bf16.msra.mxu0 %v935
    %1001 = vmatprep.subr.bf16.mxu0 %v938
    %1002 = vmatpush1.bf16.msra.mxu0 %v937
    %1003 = vmatprep.subr.bf16.mxu0 %v940
    %1004 = vmatpush1.bf16.msra.mxu0 %v939
    %1005 = vmatprep.subr.bf16.mxu0 %v942
    %1006 = vmatpush1.bf16.msra.mxu0 %v941
    %1007 = vmatprep.subr.bf16.mxu0 %v944
    %1008 = vmatpush1.bf16.msra.mxu0 %v943
    %1009 = vmatprep.subr.bf16.mxu0 %v946
    %1010 = vmatpush1.bf16.msra.mxu0 %v945
    %1011 = vmatprep.subr.bf16.mxu0 %v948
    %1012 = vmatpush1.bf16.msra.mxu0 %v947
    %1013 = vmatprep.subr.bf16.mxu0 %v950
    %1014 = vmatpush1.bf16.msra.mxu0 %v949
    %1015 = vmatprep.subr.bf16.mxu0 %v952
    %1016 = vmatpush1.bf16.msra.mxu0 %v951
    %1017 = vmatprep.subr.bf16.mxu0 %v954
    %1018 = vmatpush1.bf16.msra.mxu0 %v953
    %1019 = vmatprep.subr.bf16.mxu0 %v956
    %1020 = vmatpush1.bf16.msra.mxu0 %v955
    %1021 = vmatprep.subr.bf16.mxu0 %v958
    %1022 = vmatpush1.bf16.msra.mxu0 %v957
    %1023 = vmatprep.subr.bf16.mxu0 %v960
    %1024 = vmatpush1.bf16.msra.mxu0 %v959
    %1025 = vmatprep.subr.bf16.mxu0 %v962
    %1026 = vmatpush1.bf16.msra.mxu0 %v961
    %1027 = vmatprep.mubr.bf16.mxu0 %v790
    %1028 = vmatmul.mubr.bf16.gmra.mrb[0].mxu0 %v789
    %v1029 = vpop.f32.mrb[0].mxu0
    %v1030 = vadd.f32 %v828, %v1029
    %v1031 = vpop.f32.mrb[0].mxu0
    %v1032 = vadd.f32 %v832, %v1031
    %v1033 = vpop.f32.mrb[0].mxu0
    %v1034 = vpop.f32.mrb[0].mxu0
    %1035 = vdwg.mxu0
    %v1036 = vmax.f32 %v1030, 0.0
    %v1037 = vmax.f32 %v1032, 0.0
    %v1038 = vpack.c.bf16 %v1036, %v1036
    %v1039 = vpack.c.bf16 %v1037, %v1037
    %v1040 = vld [vmem:[#allocation11] sm:$0xff]
    %v1041 = vld [vmem:[#allocation11 + $0x8] sm:$0xff]
    %v1042 = vld [vmem:[#allocation11 + $0x10] sm:$0xff]
    %v1043 = vld [vmem:[#allocation11 + $0x18] sm:$0xff]
    %v1044 = vld [vmem:[#allocation11 + $0x20] sm:$0xff]
    %v1045 = vld [vmem:[#allocation11 + $0x28] sm:$0xff]
    %v1046 = vld [vmem:[#allocation11 + $0x30] sm:$0xff]
    %v1047 = vld [vmem:[#allocation11 + $0x38] sm:$0xff]
    %v1048 = vld [vmem:[#allocation11 + $0x40] sm:$0xff]
    %v1049 = vld [vmem:[#allocation11 + $0x48] sm:$0xff]
    %v1050 = vld [vmem:[#allocation11 + $0x50] sm:$0xff]
    %v1051 = vld [vmem:[#allocation11 + $0x58] sm:$0xff]
    %v1052 = vld [vmem:[#allocation11 + $0x60] sm:$0xff]
    %v1053 = vld [vmem:[#allocation11 + $0x68] sm:$0xff]
    %v1054 = vld [vmem:[#allocation11 + $0x70] sm:$0xff]
    %v1055 = vld [vmem:[#allocation11 + $0x78] sm:$0xff]
    %v1056 = vld [vmem:[#allocation11 + $0x80] sm:$0xff]
    %v1057 = vld [vmem:[#allocation11 + $0x88] sm:$0xff]
    %v1058 = vld [vmem:[#allocation11 + $0x90] sm:$0xff]
    %v1059 = vld [vmem:[#allocation11 + $0x98] sm:$0xff]
    %v1060 = vld [vmem:[#allocation11 + $0xa0] sm:$0xff]
    %v1061 = vld [vmem:[#allocation11 + $0xa8] sm:$0xff]
    %v1062 = vld [vmem:[#allocation11 + $0xb0] sm:$0xff]
    %v1063 = vld [vmem:[#allocation11 + $0xb8] sm:$0xff]
    %v1064 = vld [vmem:[#allocation11 + $0xc0] sm:$0xff]
    %v1065 = vld [vmem:[#allocation11 + $0xc8] sm:$0xff]
    %v1066 = vld [vmem:[#allocation11 + $0xd0] sm:$0xff]
    %v1067 = vld [vmem:[#allocation11 + $0xd8] sm:$0xff]
    %v1068 = vld [vmem:[#allocation11 + $0xe0] sm:$0xff]
    %v1069 = vld [vmem:[#allocation11 + $0xe8] sm:$0xff]
    %v1070 = vld [vmem:[#allocation11 + $0xf0] sm:$0xff]
    %v1071 = vld [vmem:[#allocation11 + $0xf8] sm:$0xff]
    %v1072 = vld [vmem:[%s10] sm:$0x3]
    %v1074 = vlaneseq
    %v1075 = vshrl.u32 %v1074, 7
    %v1076 = vsub.s32 0, %v1075
    %v1077 = vrot.slane %v1072, %v1076
    %v1078 = vlaneseq
    %v1079 = vshrl.u32 %v1078, 7
    %v1080 = vsub.s32 1, %v1079
    %v1081 = vrot.slane %v1072, %v1080
    %v1116 = vunpack.c.l.b16 %v1040
    %v1117 = vunpack.c.h.b16 %v1040
    %v1118 = vunpack.c.l.b16 %v1041
    %v1119 = vunpack.c.h.b16 %v1041
    %v1120 = vunpack.c.l.b16 %v1042
    %v1121 = vunpack.c.h.b16 %v1042
    %v1122 = vunpack.c.l.b16 %v1043
    %v1123 = vunpack.c.h.b16 %v1043
    %v1124 = vunpack.c.l.b16 %v1044
    %v1125 = vunpack.c.h.b16 %v1044
    %v1126 = vunpack.c.l.b16 %v1045
    %v1127 = vunpack.c.h.b16 %v1045
    %v1128 = vunpack.c.l.b16 %v1046
    %v1129 = vunpack.c.h.b16 %v1046
    %v1130 = vunpack.c.l.b16 %v1047
    %v1131 = vunpack.c.h.b16 %v1047
    %v1132 = vunpack.c.l.b16 %v1048
    %v1133 = vunpack.c.h.b16 %v1048
    %v1134 = vunpack.c.l.b16 %v1049
    %v1135 = vunpack.c.h.b16 %v1049
    %v1136 = vunpack.c.l.b16 %v1050
    %v1137 = vunpack.c.h.b16 %v1050
    %v1138 = vunpack.c.l.b16 %v1051
    %v1139 = vunpack.c.h.b16 %v1051
    %v1140 = vunpack.c.l.b16 %v1052
    %v1141 = vunpack.c.h.b16 %v1052
    %v1142 = vunpack.c.l.b16 %v1053
    %v1143 = vunpack.c.h.b16 %v1053
    %v1144 = vunpack.c.l.b16 %v1054
    %v1145 = vunpack.c.h.b16 %v1054
    %v1146 = vunpack.c.l.b16 %v1055
    %v1147 = vunpack.c.h.b16 %v1055
    %v1148 = vunpack.c.l.b16 %v1056
    %v1149 = vunpack.c.h.b16 %v1056
    %v1150 = vunpack.c.l.b16 %v1057
    %v1151 = vunpack.c.h.b16 %v1057
    %v1152 = vunpack.c.l.b16 %v1058
    %v1153 = vunpack.c.h.b16 %v1058
    %v1154 = vunpack.c.l.b16 %v1059
    %v1155 = vunpack.c.h.b16 %v1059
    %v1156 = vunpack.c.l.b16 %v1060
    %v1157 = vunpack.c.h.b16 %v1060
    %v1158 = vunpack.c.l.b16 %v1061
    %v1159 = vunpack.c.h.b16 %v1061
    %v1160 = vunpack.c.l.b16 %v1062
    %v1161 = vunpack.c.h.b16 %v1062
    %v1162 = vunpack.c.l.b16 %v1063
    %v1163 = vunpack.c.h.b16 %v1063
    %v1164 = vunpack.c.l.b16 %v1064
    %v1165 = vunpack.c.h.b16 %v1064
    %v1166 = vunpack.c.l.b16 %v1065
    %v1167 = vunpack.c.h.b16 %v1065
    %v1168 = vunpack.c.l.b16 %v1066
    %v1169 = vunpack.c.h.b16 %v1066
    %v1170 = vunpack.c.l.b16 %v1067
    %v1171 = vunpack.c.h.b16 %v1067
    %v1172 = vunpack.c.l.b16 %v1068
    %v1173 = vunpack.c.h.b16 %v1068
    %v1174 = vunpack.c.l.b16 %v1069
    %v1175 = vunpack.c.h.b16 %v1069
    %v1176 = vunpack.c.l.b16 %v1070
    %v1177 = vunpack.c.h.b16 %v1070
    %v1178 = vunpack.c.l.b16 %v1071
    %v1179 = vunpack.c.h.b16 %v1071
    %v1180 = vpack.c.b16 %v1118, %v1116
    %v1181 = vpack.c.b16 %v1119, %v1117
    %v1182 = vpack.c.b16 %v1122, %v1120
    %v1183 = vpack.c.b16 %v1123, %v1121
    %v1184 = vpack.c.b16 %v1126, %v1124
    %v1185 = vpack.c.b16 %v1127, %v1125
    %v1186 = vpack.c.b16 %v1130, %v1128
    %v1187 = vpack.c.b16 %v1131, %v1129
    %v1188 = vpack.c.b16 %v1134, %v1132
    %v1189 = vpack.c.b16 %v1135, %v1133
    %v1190 = vpack.c.b16 %v1138, %v1136
    %v1191 = vpack.c.b16 %v1139, %v1137
    %v1192 = vpack.c.b16 %v1142, %v1140
    %v1193 = vpack.c.b16 %v1143, %v1141
    %v1194 = vpack.c.b16 %v1146, %v1144
    %v1195 = vpack.c.b16 %v1147, %v1145
    %v1196 = vpack.c.b16 %v1150, %v1148
    %v1197 = vpack.c.b16 %v1151, %v1149
    %v1198 = vpack.c.b16 %v1154, %v1152
    %v1199 = vpack.c.b16 %v1155, %v1153
    %v1200 = vpack.c.b16 %v1158, %v1156
    %v1201 = vpack.c.b16 %v1159, %v1157
    %v1202 = vpack.c.b16 %v1162, %v1160
    %v1203 = vpack.c.b16 %v1163, %v1161
    %v1204 = vpack.c.b16 %v1166, %v1164
    %v1205 = vpack.c.b16 %v1167, %v1165
    %v1206 = vpack.c.b16 %v1170, %v1168
    %v1207 = vpack.c.b16 %v1171, %v1169
    %v1208 = vpack.c.b16 %v1174, %v1172
    %v1209 = vpack.c.b16 %v1175, %v1173
    %v1210 = vpack.c.b16 %v1178, %v1176
    %v1211 = vpack.c.b16 %v1179, %v1177
    %1244 = vmatprep.subr.bf16.mxu0 %v1181
    %1245 = vmatpush1.bf16.msra.mxu0 %v1180
    %1246 = vmatprep.subr.bf16.mxu0 %v1183
    %1247 = vmatpush1.bf16.msra.mxu0 %v1182
    %1248 = vmatprep.subr.bf16.mxu0 %v1185
    %1249 = vmatpush1.bf16.msra.mxu0 %v1184
    %1250 = vmatprep.subr.bf16.mxu0 %v1187
    %1251 = vmatpush1.bf16.msra.mxu0 %v1186
    %1252 = vmatprep.subr.bf16.mxu0 %v1189
    %1253 = vmatpush1.bf16.msra.mxu0 %v1188
    %1254 = vmatprep.subr.bf16.mxu0 %v1191
    %1255 = vmatpush1.bf16.msra.mxu0 %v1190
    %1256 = vmatprep.subr.bf16.mxu0 %v1193
    %1257 = vmatpush1.bf16.msra.mxu0 %v1192
    %1258 = vmatprep.subr.bf16.mxu0 %v1195
    %1259 = vmatpush1.bf16.msra.mxu0 %v1194
    %1260 = vmatprep.subr.bf16.mxu0 %v1197
    %1261 = vmatpush1.bf16.msra.mxu0 %v1196
    %1262 = vmatprep.subr.bf16.mxu0 %v1199
    %1263 = vmatpush1.bf16.msra.mxu0 %v1198
    %1264 = vmatprep.subr.bf16.mxu0 %v1201
    %1265 = vmatpush1.bf16.msra.mxu0 %v1200
    %1266 = vmatprep.subr.bf16.mxu0 %v1203
    %1267 = vmatpush1.bf16.msra.mxu0 %v1202
    %1268 = vmatprep.subr.bf16.mxu0 %v1205
    %1269 = vmatpush1.bf16.msra.mxu0 %v1204
    %1270 = vmatprep.subr.bf16.mxu0 %v1207
    %1271 = vmatpush1.bf16.msra.mxu0 %v1206
    %1272 = vmatprep.subr.bf16.mxu0 %v1209
    %1273 = vmatpush1.bf16.msra.mxu0 %v1208
    %1274 = vmatprep.subr.bf16.mxu0 %v1211
    %1275 = vmatpush1.bf16.msra.mxu0 %v1210
    %1276 = vmatprep.mubr.bf16.mxu0 %v1039
    %1277 = vmatmul.mubr.bf16.gmra.mrb[0].mxu0 %v1038
    %v1278 = vpop.f32.mrb[0].mxu0
    %v1279 = vadd.f32 %v1077, %v1278
    %v1280 = vpop.f32.mrb[0].mxu0
    %v1281 = vadd.f32 %v1081, %v1280
    %v1282 = vpop.f32.mrb[0].mxu0
    %v1283 = vpop.f32.mrb[0].mxu0
    %1284 = vdwg.mxu0
    %v1285 = vmax.f32 %v1279, 0.0
    %v1286 = vmax.f32 %v1281, 0.0
    %v1287 = vpack.c.bf16 %v1285, %v1285
    %v1288 = vpack.c.bf16 %v1286, %v1286
    %v1289 = vld [vmem:[#allocation13] sm:$0xff]
    %v1290 = vld [vmem:[#allocation13 + $0x8] sm:$0xff]
    %v1291 = vld [vmem:[#allocation13 + $0x10] sm:$0xff]
    %v1292 = vld [vmem:[#allocation13 + $0x18] sm:$0xff]
    %v1293 = vld [vmem:[#allocation13 + $0x20] sm:$0xff]
    %v1294 = vld [vmem:[#allocation13 + $0x28] sm:$0xff]
    %v1295 = vld [vmem:[#allocation13 + $0x30] sm:$0xff]
    %v1296 = vld [vmem:[#allocation13 + $0x38] sm:$0xff]
    %v1297 = vld [vmem:[#allocation13 + $0x40] sm:$0xff]
    %v1298 = vld [vmem:[#allocation13 + $0x48] sm:$0xff]
    %v1299 = vld [vmem:[#allocation13 + $0x50] sm:$0xff]
    %v1300 = vld [vmem:[#allocation13 + $0x58] sm:$0xff]
    %v1301 = vld [vmem:[#allocation13 + $0x60] sm:$0xff]
    %v1302 = vld [vmem:[#allocation13 + $0x68] sm:$0xff]
    %v1303 = vld [vmem:[#allocation13 + $0x70] sm:$0xff]
    %v1304 = vld [vmem:[#allocation13 + $0x78] sm:$0xff]
    %v1305 = vld [vmem:[#allocation13 + $0x80] sm:$0xff]
    %v1306 = vld [vmem:[#allocation13 + $0x88] sm:$0xff]
    %v1307 = vld [vmem:[#allocation13 + $0x90] sm:$0xff]
    %v1308 = vld [vmem:[#allocation13 + $0x98] sm:$0xff]
    %v1309 = vld [vmem:[#allocation13 + $0xa0] sm:$0xff]
    %v1310 = vld [vmem:[#allocation13 + $0xa8] sm:$0xff]
    %v1311 = vld [vmem:[#allocation13 + $0xb0] sm:$0xff]
    %v1312 = vld [vmem:[#allocation13 + $0xb8] sm:$0xff]
    %v1313 = vld [vmem:[#allocation13 + $0xc0] sm:$0xff]
    %v1314 = vld [vmem:[#allocation13 + $0xc8] sm:$0xff]
    %v1315 = vld [vmem:[#allocation13 + $0xd0] sm:$0xff]
    %v1316 = vld [vmem:[#allocation13 + $0xd8] sm:$0xff]
    %v1317 = vld [vmem:[#allocation13 + $0xe0] sm:$0xff]
    %v1318 = vld [vmem:[#allocation13 + $0xe8] sm:$0xff]
    %v1319 = vld [vmem:[#allocation13 + $0xf0] sm:$0xff]
    %v1320 = vld [vmem:[#allocation13 + $0xf8] sm:$0xff]
    %v1321 = vld [vmem:[%s12] sm:$0x3]
    %v1323 = vlaneseq
    %v1324 = vshrl.u32 %v1323, 7
    %v1325 = vsub.s32 0, %v1324
    %v1326 = vrot.slane %v1321, %v1325
    %v1327 = vlaneseq
    %v1328 = vshrl.u32 %v1327, 7
    %v1329 = vsub.s32 1, %v1328
    %v1330 = vrot.slane %v1321, %v1329
    %v1365 = vunpack.c.l.b16 %v1289
    %v1366 = vunpack.c.h.b16 %v1289
    %v1367 = vunpack.c.l.b16 %v1290
    %v1368 = vunpack.c.h.b16 %v1290
    %v1369 = vunpack.c.l.b16 %v1291
    %v1370 = vunpack.c.h.b16 %v1291
    %v1371 = vunpack.c.l.b16 %v1292
    %v1372 = vunpack.c.h.b16 %v1292
    %v1373 = vunpack.c.l.b16 %v1293
    %v1374 = vunpack.c.h.b16 %v1293
    %v1375 = vunpack.c.l.b16 %v1294
    %v1376 = vunpack.c.h.b16 %v1294
    %v1377 = vunpack.c.l.b16 %v1295
    %v1378 = vunpack.c.h.b16 %v1295
    %v1379 = vunpack.c.l.b16 %v1296
    %v1380 = vunpack.c.h.b16 %v1296
    %v1381 = vunpack.c.l.b16 %v1297
    %v1382 = vunpack.c.h.b16 %v1297
    %v1383 = vunpack.c.l.b16 %v1298
    %v1384 = vunpack.c.h.b16 %v1298
    %v1385 = vunpack.c.l.b16 %v1299
    %v1386 = vunpack.c.h.b16 %v1299
    %v1387 = vunpack.c.l.b16 %v1300
    %v1388 = vunpack.c.h.b16 %v1300
    %v1389 = vunpack.c.l.b16 %v1301
    %v1390 = vunpack.c.h.b16 %v1301
    %v1391 = vunpack.c.l.b16 %v1302
    %v1392 = vunpack.c.h.b16 %v1302
    %v1393 = vunpack.c.l.b16 %v1303
    %v1394 = vunpack.c.h.b16 %v1303
    %v1395 = vunpack.c.l.b16 %v1304
    %v1396 = vunpack.c.h.b16 %v1304
    %v1397 = vunpack.c.l.b16 %v1305
    %v1398 = vunpack.c.h.b16 %v1305
    %v1399 = vunpack.c.l.b16 %v1306
    %v1400 = vunpack.c.h.b16 %v1306
    %v1401 = vunpack.c.l.b16 %v1307
    %v1402 = vunpack.c.h.b16 %v1307
    %v1403 = vunpack.c.l.b16 %v1308
    %v1404 = vunpack.c.h.b16 %v1308
    %v1405 = vunpack.c.l.b16 %v1309
    %v1406 = vunpack.c.h.b16 %v1309
    %v1407 = vunpack.c.l.b16 %v1310
    %v1408 = vunpack.c.h.b16 %v1310
    %v1409 = vunpack.c.l.b16 %v1311
    %v1410 = vunpack.c.h.b16 %v1311
    %v1411 = vunpack.c.l.b16 %v1312
    %v1412 = vunpack.c.h.b16 %v1312
    %v1413 = vunpack.c.l.b16 %v1313
    %v1414 = vunpack.c.h.b16 %v1313
    %v1415 = vunpack.c.l.b16 %v1314
    %v1416 = vunpack.c.h.b16 %v1314
    %v1417 = vunpack.c.l.b16 %v1315
    %v1418 = vunpack.c.h.b16 %v1315
    %v1419 = vunpack.c.l.b16 %v1316
    %v1420 = vunpack.c.h.b16 %v1316
    %v1421 = vunpack.c.l.b16 %v1317
    %v1422 = vunpack.c.h.b16 %v1317
    %v1423 = vunpack.c.l.b16 %v1318
    %v1424 = vunpack.c.h.b16 %v1318
    %v1425 = vunpack.c.l.b16 %v1319
    %v1426 = vunpack.c.h.b16 %v1319
    %v1427 = vunpack.c.l.b16 %v1320
    %v1428 = vunpack.c.h.b16 %v1320
    %v1429 = vpack.c.b16 %v1367, %v1365
    %v1430 = vpack.c.b16 %v1368, %v1366
    %v1431 = vpack.c.b16 %v1371, %v1369
    %v1432 = vpack.c.b16 %v1372, %v1370
    %v1433 = vpack.c.b16 %v1375, %v1373
    %v1434 = vpack.c.b16 %v1376, %v1374
    %v1435 = vpack.c.b16 %v1379, %v1377
    %v1436 = vpack.c.b16 %v1380, %v1378
    %v1437 = vpack.c.b16 %v1383, %v1381
    %v1438 = vpack.c.b16 %v1384, %v1382
    %v1439 = vpack.c.b16 %v1387, %v1385
    %v1440 = vpack.c.b16 %v1388, %v1386
    %v1441 = vpack.c.b16 %v1391, %v1389
    %v1442 = vpack.c.b16 %v1392, %v1390
    %v1443 = vpack.c.b16 %v1395, %v1393
    %v1444 = vpack.c.b16 %v1396, %v1394
    %v1445 = vpack.c.b16 %v1399, %v1397
    %v1446 = vpack.c.b16 %v1400, %v1398
    %v1447 = vpack.c.b16 %v1403, %v1401
    %v1448 = vpack.c.b16 %v1404, %v1402
    %v1449 = vpack.c.b16 %v1407, %v1405
    %v1450 = vpack.c.b16 %v1408, %v1406
    %v1451 = vpack.c.b16 %v1411, %v1409
    %v1452 = vpack.c.b16 %v1412, %v1410
    %v1453 = vpack.c.b16 %v1415, %v1413
    %v1454 = vpack.c.b16 %v1416, %v1414
    %v1455 = vpack.c.b16 %v1419, %v1417
    %v1456 = vpack.c.b16 %v1420, %v1418
    %v1457 = vpack.c.b16 %v1423, %v1421
    %v1458 = vpack.c.b16 %v1424, %v1422
    %v1459 = vpack.c.b16 %v1427, %v1425
    %v1460 = vpack.c.b16 %v1428, %v1426
    %1493 = vmatprep.subr.bf16.mxu0 %v1430
    %1494 = vmatpush1.bf16.msra.mxu0 %v1429
    %1495 = vmatprep.subr.bf16.mxu0 %v1432
    %1496 = vmatpush1.bf16.msra.mxu0 %v1431
    %1497 = vmatprep.subr.bf16.mxu0 %v1434
    %1498 = vmatpush1.bf16.msra.mxu0 %v1433
    %1499 = vmatprep.subr.bf16.mxu0 %v1436
    %1500 = vmatpush1.bf16.msra.mxu0 %v1435
    %1501 = vmatprep.subr.bf16.mxu0 %v1438
    %1502 = vmatpush1.bf16.msra.mxu0 %v1437
    %1503 = vmatprep.subr.bf16.mxu0 %v1440
    %1504 = vmatpush1.bf16.msra.mxu0 %v1439
    %1505 = vmatprep.subr.bf16.mxu0 %v1442
    %1506 = vmatpush1.bf16.msra.mxu0 %v1441
    %1507 = vmatprep.subr.bf16.mxu0 %v1444
    %1508 = vmatpush1.bf16.msra.mxu0 %v1443
    %1509 = vmatprep.subr.bf16.mxu0 %v1446
    %1510 = vmatpush1.bf16.msra.mxu0 %v1445
    %1511 = vmatprep.subr.bf16.mxu0 %v1448
    %1512 = vmatpush1.bf16.msra.mxu0 %v1447
    %1513 = vmatprep.subr.bf16.mxu0 %v1450
    %1514 = vmatpush1.bf16.msra.mxu0 %v1449
    %1515 = vmatprep.subr.bf16.mxu0 %v1452
    %1516 = vmatpush1.bf16.msra.mxu0 %v1451
    %1517 = vmatprep.subr.bf16.mxu0 %v1454
    %1518 = vmatpush1.bf16.msra.mxu0 %v1453
    %1519 = vmatprep.subr.bf16.mxu0 %v1456
    %1520 = vmatpush1.bf16.msra.mxu0 %v1455
    %1521 = vmatprep.subr.bf16.mxu0 %v1458
    %1522 = vmatpush1.bf16.msra.mxu0 %v1457
    %1523 = vmatprep.subr.bf16.mxu0 %v1460
    %1524 = vmatpush1.bf16.msra.mxu0 %v1459
    %1525 = vmatprep.mubr.bf16.mxu0 %v1288
    %1526 = vmatmul.mubr.bf16.gmra.mrb[0].mxu0 %v1287
    %v1527 = vpop.f32.mrb[0].mxu0
    %v1528 = vadd.f32 %v1326, %v1527
    %v1529 = vpop.f32.mrb[0].mxu0
    %v1530 = vadd.f32 %v1330, %v1529
    %v1531 = vpop.f32.mrb[0].mxu0
    %v1532 = vpop.f32.mrb[0].mxu0
    %1533 = vdwg.mxu0
    %1534 = vst [vmem:[#allocation14] sm:$0xff] %v1528
    %1535 = vst [vmem:[#allocation14 + $0x8] sm:$0xff] %v1530
    // Predicated region
    $region82: #{tpu_custom_call.1} parent=1 // pred_check
      _
    $region83: #{tpu_custom_call.1} parent=1 // pred_check_branch
      %1537 = sbr.rel (0) target = $region85
    $region84: #{tpu_custom_call.1} parent=1 // pred_region
      %s1539 = ssub.s32 256, 256
      %1540 = vsyncadd [#allocation4], %s1539
      %s1542 = sshll.u32 [#allocation14], 4
      %s1543 = int_to_ptr.vmem [resolvable:$true] %s1542
      %1545 = dma.vmem_to_hbm [thread:$0]  %s1543, 256, %s13, [#allocation4]
    $region85: #{tpu_custom_call.1} parent=1 // pred_fallthru
      _
    // Predicated region
    $region86: #{tpu_custom_call.1} parent=1 // pred_check
      _
    $region87: #{tpu_custom_call.1} parent=1 // pred_check_branch
      %1547 = sbr.rel (0) target = $region89
    $region88: #{tpu_custom_call.1} parent=1 // pred_region
      %1548 = dma.done [#allocation4], 256
    $region89: #{tpu_custom_call.1} parent=1 // pred_fallthru
      _
    %1549 = vsyncpa [#allocation3], 1
    %1550 = vsyncpa [#allocation6], 1
    %1551 = vsyncpa [#allocation9], 1
    %1552 = vsyncpa [#allocation12], 1
    %1553 = vsyncpa [#allocation4], 1

</llo_original>
